<compile_context>
chip_gen: v7x
topology: tpu7x:2x2x1
jax: 0.10.0
libtpu: 0.0.40
codegen_flags: <defaults>
</compile_context>

<pallas_src>
import jax
import jax.numpy as jnp
from jax.experimental import pallas as pl
from jax.experimental.pallas import tpu as pltpu


def _make_kernel(bg: int, n: int):
    """Kernel factory closing over the per-step graph count and nodes/graph."""

    def kernel(x_ref, a_ref, w1_ref, proto_t_ref, p_sq_ref, wc_ref, bc_ref,
               avg_ref, logits_ref, prob_ref, emb1_ref, emb2_ref, dist_ref):
        f_dim = x_ref.shape[-1]
        h_dim = w1_ref.shape[-1]

        # --- Fused feature projection: one [BG*N, F] @ [F, H] MXU matmul ----
        x2 = x_ref[...].reshape(bg * n, f_dim)                       # [BG*N, F]
        xw = jnp.dot(x2, w1_ref[...],
                     preferred_element_type=jnp.float32)             # [BG*N, H]
        xw = xw.reshape(bg, n, h_dim).astype(a_ref.dtype)            # [BG, N, H]

        # --- Message passing: block-diagonal A, batched matmul ---------------
        h = jnp.einsum('bij,bjh->bih', a_ref[...], xw,
                       preferred_element_type=jnp.float32)           # [BG, N, H]
        h = jnp.maximum(h, 0.0)
        emb1_ref[...] = h.astype(emb1_ref.dtype)

        # --- Graph readout (mean over nodes) as an MXU matmul ----------------
        # avg is a [BG, BG*N] block-diagonal matrix with 1/N entries.
        g = jnp.dot(avg_ref[...], h.reshape(bg * n, h_dim),
                    preferred_element_type=jnp.float32)              # [BG, H]
        emb2_ref[...] = g.astype(emb2_ref.dtype)

        # --- Squared L2 distances to prototypes (proto.T / ||p||^2 hoisted) --
        g_sq = jnp.sum(g * g, axis=-1, keepdims=True)                # [BG, 1]
        cross = jnp.dot(g, proto_t_ref[...],
                        preferred_element_type=jnp.float32)          # [BG, P]
        dist = g_sq - 2.0 * cross + p_sq_ref[...]
        dist_ref[...] = jnp.maximum(dist, 0.0)

        # --- Classifier head + softmax ---------------------------------------
        logits = jnp.dot(g, wc_ref[...],
                         preferred_element_type=jnp.float32) + bc_ref[...]
        logits_ref[...] = logits
        m = jnp.max(logits, axis=-1, keepdims=True)
        e = jnp.exp(logits - m)
        denom = jnp.sum(e, axis=-1, keepdims=True)
        prob_ref[...] = e * pl.reciprocal(denom, approx=True)

    return kernel


def gnn_forward(x, a, w1, proto, wc, bc, *, block_graphs=8,
                matmul_dtype=jnp.float32):
    """Batched-graph GNN forward.

    x: [B, N, F] node features; a: [B, N, N] row-normalized dense adjacency.
    Returns (logits, prob, emb1, emb2, min_distances).
    Set matmul_dtype=jnp.bfloat16 on v6e/v7x for peak MXU rate (f32 accumulate).
    """
    B, N, F = x.shape
    H = w1.shape[1]
    P = proto.shape[0]
    C = wc.shape[1]

    bg = min(block_graphs, B)
    assert B % bg == 0, "batch must be divisible by block_graphs"
    grid = (B // bg,)

    # Hoisted loop-invariant prototype math.
    proto_f32 = proto.astype(jnp.float32)
    proto_t = proto_f32.T                                            # [H, P]
    p_sq = jnp.sum(proto_f32 * proto_f32, axis=1)[None, :]           # [1, P]

    # Block-diagonal averaging matrix: readout mean as a single MXU matmul.
    avg = (jnp.kron(jnp.eye(bg, dtype=jnp.float32),
                    jnp.ones((1, N), dtype=jnp.float32)) / N)        # [bg, bg*N]

    # Optional bf16 operands for the MXU-heavy matmuls (accumulation stays f32).
    xm = x.astype(matmul_dtype)
    am = a.astype(matmul_dtype)
    w1m = w1.astype(matmul_dtype)
    wc_f = wc.astype(jnp.float32)
    bc_f = bc.astype(jnp.float32)

    out_shapes = (
        jax.ShapeDtypeStruct((B, C), jnp.float32),      # logits
        jax.ShapeDtypeStruct((B, C), jnp.float32),      # prob
        jax.ShapeDtypeStruct((B, N, H), jnp.float32),   # emb1
        jax.ShapeDtypeStruct((B, H), jnp.float32),      # emb2
        jax.ShapeDtypeStruct((B, P), jnp.float32),      # min_distances
    )

    itm = jnp.dtype(matmul_dtype).itemsize
    flops = (2 * B * N * F * H          # X @ W1
             + 2 * B * N * N * H        # A @ (X W1)
             + 2 * B * bg * N * H       # readout matmul (as executed)
             + 2 * B * H * (P + C))     # prototype cross + classifier
    bytes_accessed = (itm * (B * N * F + B * N * N + F * H)
                      + 4 * (H * P + P + H * C + C + bg * bg * N)
                      + 4 * (2 * B * C + B * N * H + B * H + B * P))
    cost = pl.CostEstimate(flops=flops,
                           transcendentals=B * (C + 1),
                           bytes_accessed=bytes_accessed)

    grid_spec = pltpu.PrefetchScalarGridSpec(
        num_scalar_prefetch=0,
        grid=grid,
        in_specs=[
            pl.BlockSpec((bg, N, F), lambda g: (g, 0, 0)),   # x
            pl.BlockSpec((bg, N, N), lambda g: (g, 0, 0)),   # a
            pl.BlockSpec((F, H), lambda g: (0, 0)),          # w1
            pl.BlockSpec((H, P), lambda g: (0, 0)),          # proto_t (hoisted)
            pl.BlockSpec((1, P), lambda g: (0, 0)),          # ||proto||^2 (hoisted)
            pl.BlockSpec((H, C), lambda g: (0, 0)),          # wc
            pl.BlockSpec((1, C), lambda g: (0, 0)),          # bc
            pl.BlockSpec((bg, bg * N), lambda g: (0, 0)),    # readout avg matrix
        ],
        out_specs=[
            pl.BlockSpec((bg, C), lambda g: (g, 0)),         # logits
            pl.BlockSpec((bg, C), lambda g: (g, 0)),         # prob
            pl.BlockSpec((bg, N, H), lambda g: (g, 0, 0)),   # emb1 (lane-dense, H=128)
            pl.BlockSpec((bg, H), lambda g: (g, 0)),         # emb2 (lane-dense)
            pl.BlockSpec((bg, P), lambda g: (g, 0)),         # min_distances
        ],
    )

    return pl.pallas_call(
        _make_kernel(bg, N),
        out_shape=out_shapes,
        grid_spec=grid_spec,
        cost_estimate=cost,
        compiler_params=pltpu.CompilerParams(
            dimension_semantics=("parallel",)),
    )(xm, am, w1m, proto_t, p_sq, wc_f, bc_f, avg)


if __name__ == "__main__":
    # Small shapes consistent with a batched-graph forward.  H=128 keeps the
    # large outputs lane-dense; BG=8 graphs per grid step -> grid=(2,), so the
    # fused projection matmul has BG*N = 128 rows and both v7x TCs get work.
    B, N, F, H, P, C = 16, 16, 32, 128, 8, 4
    BG = 8

    key = jax.random.PRNGKey(0)
    kx, ka, kw1, kp, kwc = jax.random.split(key, 5)

    # Inputs: node features + dense row-normalized adjacency with self loops.
    x = jax.random.normal(kx, (B, N, F), dtype=jnp.float32)
    a_raw = (jax.random.uniform(ka, (B, N, N)) > 0.7).astype(jnp.float32)
    a_sym = jnp.clip(a_raw + jnp.transpose(a_raw, (0, 2, 1)), 0.0, 1.0)
    a_sym = a_sym + jnp.eye(N, dtype=jnp.float32)[None, :, :]
    a = a_sym / jnp.sum(a_sym, axis=-1, keepdims=True)

    # Deterministic synthetic parameters (no checkpoint loading).
    w1 = jax.random.normal(kw1, (F, H), dtype=jnp.float32) * (1.0 / jnp.sqrt(F))
    proto = jax.random.normal(kp, (P, H), dtype=jnp.float32)
    wc = jax.random.normal(kwc, (H, C), dtype=jnp.float32) * (1.0 / jnp.sqrt(H))
    bc = jnp.zeros((1, C), dtype=jnp.float32)

    logits, prob, emb1, emb2, min_distances = jax.block_until_ready(
        gnn_forward(x, a, w1, proto, wc, bc, block_graphs=BG))

    # Lightweight sanity checks against a pure-JAX reference.
    h_ref = jnp.maximum(jnp.einsum('bij,bjf,fh->bih', a, x, w1), 0.0)
    g_ref = jnp.mean(h_ref, axis=1)
    d_ref = jnp.sum((g_ref[:, None, :] - proto[None, :, :]) ** 2, axis=-1)
    logits_ref = g_ref @ wc + bc
    prob_ref = jax.nn.softmax(logits_ref, axis=-1)

    assert jnp.allclose(emb1, h_ref, atol=1e-4), "emb1 mismatch"
    assert jnp.allclose(emb2, g_ref, atol=1e-4), "emb2 mismatch"
    assert jnp.allclose(min_distances, d_ref, atol=1e-3, rtol=1e-4), \
        "min_distances mismatch"
    assert jnp.allclose(logits, logits_ref, atol=1e-4), "logits mismatch"
    assert jnp.allclose(prob, prob_ref, atol=2e-3), "prob mismatch"

    print("KERNEL_OK")
</pallas_src>

<mosaic_0001>
module attributes {stable_mosaic.version = 11 : i64} {
  func.func @kernel(%arg0: i32, %arg1: memref<8x16x32xf32, #tpu.memory_space<vmem>>, %arg2: memref<8x16x16xf32, #tpu.memory_space<vmem>>, %arg3: memref<32x128xf32, #tpu.memory_space<vmem>>, %arg4: memref<128x8xf32, #tpu.memory_space<vmem>>, %arg5: memref<1x8xf32, #tpu.memory_space<vmem>>, %arg6: memref<128x4xf32, #tpu.memory_space<vmem>>, %arg7: memref<1x4xf32, #tpu.memory_space<vmem>>, %arg8: memref<8x128xf32, #tpu.memory_space<vmem>>, %arg9: memref<8x4xf32, #tpu.memory_space<vmem>>, %arg10: memref<8x4xf32, #tpu.memory_space<vmem>>, %arg11: memref<8x16x128xf32, #tpu.memory_space<vmem>>, %arg12: memref<8x128xf32, #tpu.memory_space<vmem>>, %arg13: memref<8x8xf32, #tpu.memory_space<vmem>>) attributes {dimension_semantics = [#tpu.dimension_semantics<parallel>], iteration_bounds = array<i64: 2>, scalar_prefetch = 0 : i64, scratch_operands = 0 : i64, tpu.core_type = #tpu.core_type<tc>, window_params = [{transform_indices = @transform_0, window_bounds = array<i64: 8, 16, 32>}, {transform_indices = @transform_1, window_bounds = array<i64: 8, 16, 16>}, {pipeline_mode = #tpu.pipeline_mode<synchronous>, transform_indices = @transform_2, window_bounds = array<i64: 32, 128>}, {pipeline_mode = #tpu.pipeline_mode<synchronous>, transform_indices = @transform_3, window_bounds = array<i64: 128, 8>}, {pipeline_mode = #tpu.pipeline_mode<synchronous>, transform_indices = @transform_4, window_bounds = array<i64: 1, 8>}, {pipeline_mode = #tpu.pipeline_mode<synchronous>, transform_indices = @transform_5, window_bounds = array<i64: 128, 4>}, {pipeline_mode = #tpu.pipeline_mode<synchronous>, transform_indices = @transform_6, window_bounds = array<i64: 1, 4>}, {pipeline_mode = #tpu.pipeline_mode<synchronous>, transform_indices = @transform_7, window_bounds = array<i64: 8, 128>}, {transform_indices = @transform_8, window_bounds = array<i64: 8, 4>}, {transform_indices = @transform_9, window_bounds = array<i64: 8, 4>}, {transform_indices = @transform_10, window_bounds = array<i64: 8, 16, 128>}, {transform_indices = @transform_11, window_bounds = array<i64: 8, 128>}, {transform_indices = @transform_12, window_bounds = array<i64: 8, 8>}]} {
    %c0 = arith.constant 0 : index
    %c0_0 = arith.constant 0 : index
    %c0_1 = arith.constant 0 : index
    %0 = vector.load %arg1[%c0, %c0_0, %c0_1] : memref<8x16x32xf32, #tpu.memory_space<vmem>>, vector<8x16x32xf32>
    %1 = vector.shape_cast %0 : vector<8x16x32xf32> to vector<128x32xf32>
    %c0_2 = arith.constant 0 : index
    %c0_3 = arith.constant 0 : index
    %2 = vector.load %arg3[%c0_2, %c0_3] : memref<32x128xf32, #tpu.memory_space<vmem>>, vector<32x128xf32>
    %cst = arith.constant dense<0.000000e+00> : vector<128x128xf32>
    %3 = tpu.matmul %1, %2, %cst {dimension_numbers = #tpu.dot_dimension_numbers<[1], [0], [0], [1], [0, 0, 1, 1], [], []>} : vector<128x32xf32>, vector<32x128xf32>, vector<128x128xf32> -> vector<128x128xf32>
    %4 = vector.shape_cast %3 : vector<128x128xf32> to vector<8x16x128xf32>
    %c0_4 = arith.constant 0 : index
    %c0_5 = arith.constant 0 : index
    %c0_6 = arith.constant 0 : index
    %5 = vector.load %arg2[%c0_4, %c0_5, %c0_6] : memref<8x16x16xf32, #tpu.memory_space<vmem>>, vector<8x16x16xf32>
    "tpu.trace_start"() <{level = 10 : i32, message = "bij,bjh->bih"}> : () -> ()
    %cst_7 = arith.constant dense<0.000000e+00> : vector<8x16x128xf32>
    %6 = tpu.matmul %5, %4, %cst_7 {dimension_numbers = #tpu.dot_dimension_numbers<[2], [1], [1], [2], [0, 0, 0, 1, 1, 2], [0], [0]>} : vector<8x16x16xf32>, vector<8x16x128xf32>, vector<8x16x128xf32> -> vector<8x16x128xf32>
    "tpu.trace_stop"() : () -> ()
    %cst_8 = arith.constant 0.000000e+00 : f32
    %7 = vector.broadcast %cst_8 : f32 to vector<8x16x128xf32>
    %8 = arith.maximumf %6, %7 : vector<8x16x128xf32>
    %c0_9 = arith.constant 0 : index
    %c0_10 = arith.constant 0 : index
    %c0_11 = arith.constant 0 : index
    %9 = vector.load %arg11[%c0_9, %c0_10, %c0_11] : memref<8x16x128xf32, #tpu.memory_space<vmem>>, vector<8x16x128xf32>
    tpu.vector_store %arg11[%c0_9, %c0_10, %c0_11], %8 {strides = array<i32>} : memref<8x16x128xf32, #tpu.memory_space<vmem>>, vector<8x16x128xf32>,
    %c0_12 = arith.constant 0 : index
    %c0_13 = arith.constant 0 : index
    %10 = vector.load %arg8[%c0_12, %c0_13] : memref<8x128xf32, #tpu.memory_space<vmem>>, vector<8x128xf32>
    %11 = vector.shape_cast %8 : vector<8x16x128xf32> to vector<128x128xf32>
    %cst_14 = arith.constant dense<0.000000e+00> : vector<8x128xf32>
    %12 = tpu.matmul %10, %11, %cst_14 {dimension_numbers = #tpu.dot_dimension_numbers<[1], [0], [0], [1], [0, 0, 1, 1], [], []>} : vector<8x128xf32>, vector<128x128xf32>, vector<8x128xf32> -> vector<8x128xf32>
    %c0_15 = arith.constant 0 : index
    %c0_16 = arith.constant 0 : index
    %13 = vector.load %arg12[%c0_15, %c0_16] : memref<8x128xf32, #tpu.memory_space<vmem>>, vector<8x128xf32>
    tpu.vector_store %arg12[%c0_15, %c0_16], %12 {strides = array<i32>} : memref<8x128xf32, #tpu.memory_space<vmem>>, vector<8x128xf32>,
    %14 = arith.mulf %12, %12 : vector<8x128xf32>
    %cst_17 = arith.constant dense<0.000000e+00> : vector<8xf32>
    %15 = vector.multi_reduction <add>, %14, %cst_17 [1] : vector<8x128xf32> to vector<8xf32>
    %16 = vector.shape_cast %15 : vector<8xf32> to vector<8x1xf32>
    %c0_18 = arith.constant 0 : index
    %c0_19 = arith.constant 0 : index
    %17 = vector.load %arg4[%c0_18, %c0_19] : memref<128x8xf32, #tpu.memory_space<vmem>>, vector<128x8xf32>
    %cst_20 = arith.constant dense<0.000000e+00> : vector<8x8xf32>
    %18 = tpu.matmul %12, %17, %cst_20 {dimension_numbers = #tpu.dot_dimension_numbers<[1], [0], [0], [1], [0, 0, 1, 1], [], []>} : vector<8x128xf32>, vector<128x8xf32>, vector<8x8xf32> -> vector<8x8xf32>
    %cst_21 = arith.constant 2.000000e+00 : f32
    %19 = vector.broadcast %cst_21 : f32 to vector<8x8xf32>
    %20 = arith.mulf %19, %18 : vector<8x8xf32>
    %21 = vector.broadcast %16 : vector<8x1xf32> to vector<8x8xf32>
    %22 = arith.subf %21, %20 : vector<8x8xf32>
    %c0_22 = arith.constant 0 : index
    %c0_23 = arith.constant 0 : index
    %23 = vector.load %arg5[%c0_22, %c0_23] : memref<1x8xf32, #tpu.memory_space<vmem>>, vector<1x8xf32>
    %24 = vector.broadcast %23 : vector<1x8xf32> to vector<8x8xf32>
    %25 = arith.addf %22, %24 : vector<8x8xf32>
    %cst_24 = arith.constant 0.000000e+00 : f32
    %26 = vector.broadcast %cst_24 : f32 to vector<8x8xf32>
    %27 = arith.maximumf %25, %26 : vector<8x8xf32>
    %c0_25 = arith.constant 0 : index
    %c0_26 = arith.constant 0 : index
    %28 = vector.load %arg13[%c0_25, %c0_26] : memref<8x8xf32, #tpu.memory_space<vmem>>, vector<8x8xf32>
    tpu.vector_store %arg13[%c0_25, %c0_26], %27 {strides = array<i32>} : memref<8x8xf32, #tpu.memory_space<vmem>>, vector<8x8xf32>,
    %c0_27 = arith.constant 0 : index
    %c0_28 = arith.constant 0 : index
    %29 = vector.load %arg6[%c0_27, %c0_28] : memref<128x4xf32, #tpu.memory_space<vmem>>, vector<128x4xf32>
    %cst_29 = arith.constant dense<0.000000e+00> : vector<8x4xf32>
    %30 = tpu.matmul %12, %29, %cst_29 {dimension_numbers = #tpu.dot_dimension_numbers<[1], [0], [0], [1], [0, 0, 1, 1], [], []>} : vector<8x128xf32>, vector<128x4xf32>, vector<8x4xf32> -> vector<8x4xf32>
    %c0_30 = arith.constant 0 : index
    %c0_31 = arith.constant 0 : index
    %31 = vector.load %arg7[%c0_30, %c0_31] : memref<1x4xf32, #tpu.memory_space<vmem>>, vector<1x4xf32>
    %32 = vector.broadcast %31 : vector<1x4xf32> to vector<8x4xf32>
    %33 = arith.addf %30, %32 : vector<8x4xf32>
    %c0_32 = arith.constant 0 : index
    %c0_33 = arith.constant 0 : index
    %34 = vector.load %arg9[%c0_32, %c0_33] : memref<8x4xf32, #tpu.memory_space<vmem>>, vector<8x4xf32>
    tpu.vector_store %arg9[%c0_32, %c0_33], %33 {strides = array<i32>} : memref<8x4xf32, #tpu.memory_space<vmem>>, vector<8x4xf32>,
    %cst_34 = arith.constant dense<0xFF800000> : vector<8xf32>
    %35 = vector.multi_reduction <maximumf>, %33, %cst_34 [1] : vector<8x4xf32> to vector<8xf32>
    %36 = vector.shape_cast %35 : vector<8xf32> to vector<8x1xf32>
    %37 = vector.broadcast %36 : vector<8x1xf32> to vector<8x4xf32>
    %38 = arith.subf %33, %37 : vector<8x4xf32>
    %39 = math.exp %38 : vector<8x4xf32>
    %cst_35 = arith.constant dense<0.000000e+00> : vector<8xf32>
    %40 = vector.multi_reduction <add>, %39, %cst_35 [1] : vector<8x4xf32> to vector<8xf32>
    %41 = vector.shape_cast %40 : vector<8xf32> to vector<8x1xf32>
    %42 = tpu.reciprocal %41 {approx = true} : vector<8x1xf32> -> vector<8x1xf32>
    %43 = vector.broadcast %42 : vector<8x1xf32> to vector<8x4xf32>
    %44 = arith.mulf %39, %43 : vector<8x4xf32>
    %c0_36 = arith.constant 0 : index
    %c0_37 = arith.constant 0 : index
    %45 = vector.load %arg10[%c0_36, %c0_37] : memref<8x4xf32, #tpu.memory_space<vmem>>, vector<8x4xf32>
    tpu.vector_store %arg10[%c0_36, %c0_37], %44 {strides = array<i32>} : memref<8x4xf32, #tpu.memory_space<vmem>>, vector<8x4xf32>,
    return
  }
  func.func @transform_0(%arg0: i32) -> (i32, i32, i32) {
    %c0_i32 = arith.constant 0 : i32
    %c0_i32_0 = arith.constant 0 : i32
    %c0_i32_1 = arith.constant 0 : i32
    return %arg0, %c0_i32, %c0_i32_0 : i32, i32, i32
  }
  func.func @transform_1(%arg0: i32) -> (i32, i32, i32) {
    %c0_i32 = arith.constant 0 : i32
    %c0_i32_0 = arith.constant 0 : i32
    %c0_i32_1 = arith.constant 0 : i32
    return %arg0, %c0_i32, %c0_i32_0 : i32, i32, i32
  }
  func.func @transform_2(%arg0: i32) -> (i32, i32) {
    %c0_i32 = arith.constant 0 : i32
    %c0_i32_0 = arith.constant 0 : i32
    %c0_i32_1 = arith.constant 0 : i32
    return %c0_i32, %c0_i32_0 : i32, i32
  }
  func.func @transform_3(%arg0: i32) -> (i32, i32) {
    %c0_i32 = arith.constant 0 : i32
    %c0_i32_0 = arith.constant 0 : i32
    %c0_i32_1 = arith.constant 0 : i32
    return %c0_i32, %c0_i32_0 : i32, i32
  }
  func.func @transform_4(%arg0: i32) -> (i32, i32) {
    %c0_i32 = arith.constant 0 : i32
    %c0_i32_0 = arith.constant 0 : i32
    %c0_i32_1 = arith.constant 0 : i32
    return %c0_i32, %c0_i32_0 : i32, i32
  }
  func.func @transform_5(%arg0: i32) -> (i32, i32) {
    %c0_i32 = arith.constant 0 : i32
    %c0_i32_0 = arith.constant 0 : i32
    %c0_i32_1 = arith.constant 0 : i32
    return %c0_i32, %c0_i32_0 : i32, i32
  }
  func.func @transform_6(%arg0: i32) -> (i32, i32) {
    %c0_i32 = arith.constant 0 : i32
    %c0_i32_0 = arith.constant 0 : i32
    %c0_i32_1 = arith.constant 0 : i32
    return %c0_i32, %c0_i32_0 : i32, i32
  }
  func.func @transform_7(%arg0: i32) -> (i32, i32) {
    %c0_i32 = arith.constant 0 : i32
    %c0_i32_0 = arith.constant 0 : i32
    %c0_i32_1 = arith.constant 0 : i32
    return %c0_i32, %c0_i32_0 : i32, i32
  }
  func.func @transform_8(%arg0: i32) -> (i32, i32) {
    %c0_i32 = arith.constant 0 : i32
    %c0_i32_0 = arith.constant 0 : i32
    return %arg0, %c0_i32 : i32, i32
  }
  func.func @transform_9(%arg0: i32) -> (i32, i32) {
    %c0_i32 = arith.constant 0 : i32
    %c0_i32_0 = arith.constant 0 : i32
    return %arg0, %c0_i32 : i32, i32
  }
  func.func @transform_10(%arg0: i32) -> (i32, i32, i32) {
    %c0_i32 = arith.constant 0 : i32
    %c0_i32_0 = arith.constant 0 : i32
    %c0_i32_1 = arith.constant 0 : i32
    return %arg0, %c0_i32, %c0_i32_0 : i32, i32, i32
  }
  func.func @transform_11(%arg0: i32) -> (i32, i32) {
    %c0_i32 = arith.constant 0 : i32
    %c0_i32_0 = arith.constant 0 : i32
    return %arg0, %c0_i32 : i32, i32
  }
  func.func @transform_12(%arg0: i32) -> (i32, i32) {
    %c0_i32 = arith.constant 0 : i32
    %c0_i32_0 = arith.constant 0 : i32
    return %arg0, %c0_i32 : i32, i32
  }
}

</mosaic_0001>

<llo_original>
// kernel: tpu_custom_call.1
$region0: #{tpu_custom_call.1}
  #allocation0 [shape = 'u32[]', space=smem, size = 0x4, offset = 0x4, fixed_abs, tag = 'smem constant byte address 0x4 - core index']
  #allocation1 [shape = 'u32[144,128]{1,0:T(1,128)}', space=vmem, size = 0x12000, scoped, tag = 'internal scratch']
  %s0 = inlined_call_operand.vmem [shape: f32[16,16,32], index: 0, kind: input, shape index: {}]
  %s1 = inlined_call_operand.hbm [shape: f32[16,16,16], index: 1, kind: input, shape index: {}]
  %s2 = inlined_call_operand.hbm [shape: f32[32,128], index: 2, kind: input, shape index: {}]
  %s3 = inlined_call_operand.vmem [shape: f32[128,8], index: 3, kind: input, shape index: {}]
  %s4 = inlined_call_operand.vmem [shape: f32[1,8], index: 4, kind: input, shape index: {}]
  %s5 = inlined_call_operand.vmem [shape: f32[128,4], index: 5, kind: input, shape index: {}]
  %s6 = inlined_call_operand.vmem [shape: f32[1,4], index: 6, kind: input, shape index: {}]
  %s7 = inlined_call_operand.vmem [shape: f32[8,128], index: 7, kind: input, shape index: {}]
  %s8 = inlined_call_operand.vmem [shape: f32[16,4], index: 8, kind: output, shape index: {0}]
  %s9 = inlined_call_operand.vmem [shape: f32[16,4], index: 9, kind: output, shape index: {1}]
  %s10 = inlined_call_operand.hbm [shape: f32[16,16,128], index: 10, kind: output, shape index: {2}]
  %s11 = inlined_call_operand.hbm [shape: f32[16,128], index: 11, kind: output, shape index: {3}]
  %s12 = inlined_call_operand.vmem [shape: f32[16,8], index: 12, kind: output, shape index: {4}]
  %13 = xla_tuple %s8, %s9, %s10, %s11, %s12
  %s14 = sld [smem:[#allocation0]]
  $region105: #{tpu_custom_call.1} parent=0
    _
  %s16 = ssub.s32 1, %s14
  %s17 = scalar_select 0, %s16, %s14
  $region1: #{tpu_custom_call.1} parent=0
    #allocation2 [shape = 'u8[131072]{0}', space=vmem, size = 0x20000, scoped, tag = 'input window, operand 1']
    #allocation3 [shape = 's32[2]{0}', space=sflag, size = 0x8, scoped, tag = 'scoped memory for tpu_custom_call.1']
    #allocation4 [shape = 's32[2]{0}', space=sflag, size = 0x8, scoped, tag = 'scoped memory for tpu_custom_call.1']
    #allocation5 [shape = 'u8[16384]{0}', space=vmem, size = 0x4000, scoped, tag = 'input window, operand 2, single buffered']
    #allocation6 [shape = 's32[1]{0}', space=sflag, size = 0x4, scoped, tag = 'scoped memory for tpu_custom_call.1']
    #allocation7 [shape = 'u8[131072]{0}', space=vmem, size = 0x20000, scoped, tag = 'output window, operand 2']
    #allocation8 [shape = 'u8[8192]{0}', space=vmem, size = 0x2000, scoped, tag = 'output window, operand 3']
    #allocation9 [shape = 's32[2]{0}', space=sflag, size = 0x8, scoped, tag = 'scoped memory for tpu_custom_call.1']
    %18 = vsyncpa [#allocation3], 0
    %s19 = scalar_lea.sflag [#allocation3], 1
    %20 = vsyncpa %s19, 0
    %21 = vsyncpa [#allocation6], 0
    %22 = vsyncpa [#allocation4], 0
    %s23 = scalar_lea.sflag [#allocation4], 1
    %24 = vsyncpa %s23, 0
    %25 = vsyncpa [#allocation9], 0
    %s26 = scalar_lea.sflag [#allocation9], 1
    %27 = vsyncpa %s26, 0
    loop: start=0, step=1, limit=4
    $region2: #{tpu_custom_call.1} parent=1 // loop_pre_header
      _
    $region3: #{tpu_custom_call.1} parent=1 // loop_header
      %s29 = sphi 0, %s33
      %p30 = scmp.ge.s32.totalorder %s29, 4
      %s39 = sphi 0, %s41
      %s42 = sphi 0, %s39
      %s43 = sphi 0, %s42
      %s59 = sphi 0, %s43
      %s65 = sphi 0, %s67
      %s68 = sphi 0, %s65
      %s69 = sphi 0, %s68
      %s85 = sphi 0, %s69
      %s89 = sphi 0, %s89
      %s91 = sphi 0, %s89
      %s92 = sphi 0, %s91
      %s106 = sphi 0, %s92
      %s110 = sphi 0, %s110
      %s112 = sphi 0, %s110
      %s113 = sphi 0, %s112
      %s127 = sphi 0, %s113
      %s131 = sphi 0, %s131
      %s133 = sphi 0, %s131
      %s134 = sphi 0, %s133
      %s148 = sphi 0, %s134
      %s152 = sphi 0, %s152
      %s154 = sphi 0, %s152
      %s155 = sphi 0, %s154
      %s169 = sphi 0, %s155
      %s173 = sphi 0, %s173
      %s175 = sphi 0, %s173
      %s176 = sphi 0, %s175
      %s190 = sphi 0, %s176
      %s194 = sphi 0, %s194
      %s196 = sphi 0, %s194
      %s197 = sphi 0, %s196
      %s211 = sphi 0, %s197
      %s217 = sphi 0, %s219
      %s220 = sphi 0, %s217
      %s221 = sphi 0, %s220
      %s237 = sphi 0, %s221
      %s243 = sphi 0, %s245
      %s246 = sphi 0, %s243
      %s247 = sphi 0, %s246
      %s263 = sphi 0, %s247
      %s269 = sphi 0, %s271
      %s272 = sphi 0, %s269
      %s273 = sphi 0, %s272
      %s289 = sphi 0, %s273
      %s295 = sphi 0, %s297
      %s298 = sphi 0, %s295
      %s299 = sphi 0, %s298
      %s315 = sphi 0, %s299
      %s321 = sphi 0, %s323
      %s324 = sphi 0, %s321
      %s325 = sphi 0, %s324
      %s341 = sphi 0, %s325
    $region4: #{tpu_custom_call.1} parent=1 // loop_header_branch
      %32 = sbr.rel (%p30) target = $region8
    $region5: #{tpu_custom_call.1} parent=1 // loop_body
      %s34 = ssub.s32 %s29, 1
      %s35 = ssub.s32 %s29, 2
      %s36 = sadd.s32 %s29, 1
      %s37 = ssub.s32 %s29, %s36
      %p38 = scmp.eq.s32.totalorder %s37, 0
      %s40 = sadd.s32 %s39, 1
      %s41 = scalar_select %p38, %s39, %s40
      %p44 = pneg %p38
      %p45 = scmp.eq.s32.totalorder %s29, 1
      %p46 = por %p44, %p45
      %p47 = scmp.ne.s32.totalorder %s39, %s42
      %p48 = scmp.eq.s32.totalorder %s29, 0
      %p49 = por %p47, %p48
      %p50 = scmp.ne.s32.totalorder %s39, %s42
      %p51 = scmp.eq.s32.totalorder %s34, 1
      %p52 = por %p50, %p51
      %p53 = scmp.ne.s32.totalorder %s42, %s43
      %p54 = scmp.eq.s32.totalorder %s34, 0
      %p55 = por %p53, %p54
      %p56 = scmp.ne.s32.totalorder %s42, %s43
      %p57 = scmp.eq.s32.totalorder %s35, 1
      %p58 = por %p56, %p57
      %p60 = scmp.ne.s32.totalorder %s43, %s59
      %p61 = scmp.eq.s32.totalorder %s35, 0
      %p62 = por %p60, %p61
      %s63 = ssub.s32 %s29, %s36
      %p64 = scmp.eq.s32.totalorder %s63, 0
      %s66 = sadd.s32 %s65, 1
      %s67 = scalar_select %p64, %s65, %s66
      %p70 = pneg %p64
      %p71 = scmp.eq.s32.totalorder %s29, 1
      %p72 = por %p70, %p71
      %p73 = scmp.ne.s32.totalorder %s65, %s68
      %p74 = scmp.eq.s32.totalorder %s29, 0
      %p75 = por %p73, %p74
      %p76 = scmp.ne.s32.totalorder %s65, %s68
      %p77 = scmp.eq.s32.totalorder %s34, 1
      %p78 = por %p76, %p77
      %p79 = scmp.ne.s32.totalorder %s68, %s69
      %p80 = scmp.eq.s32.totalorder %s34, 0
      %p81 = por %p79, %p80
      %p82 = scmp.ne.s32.totalorder %s68, %s69
      %p83 = scmp.eq.s32.totalorder %s35, 1
      %p84 = por %p82, %p83
      %p86 = scmp.ne.s32.totalorder %s69, %s85
      %p87 = scmp.eq.s32.totalorder %s35, 0
      %p88 = por %p86, %p87
      %s90 = sadd.s32 %s89, 1
      %p93 = scmp.eq.s32.totalorder %s29, 1
      %p94 = scmp.ne.s32.totalorder %s89, %s91
      %p95 = scmp.eq.s32.totalorder %s29, 0
      %p96 = por %p94, %p95
      %p97 = scmp.ne.s32.totalorder %s89, %s91
      %p98 = scmp.eq.s32.totalorder %s34, 1
      %p99 = por %p97, %p98
      %p100 = scmp.ne.s32.totalorder %s91, %s92
      %p101 = scmp.eq.s32.totalorder %s34, 0
      %p102 = por %p100, %p101
      %p103 = scmp.ne.s32.totalorder %s91, %s92
      %p104 = scmp.eq.s32.totalorder %s35, 1
      %p105 = por %p103, %p104
      %p107 = scmp.ne.s32.totalorder %s92, %s106
      %p108 = scmp.eq.s32.totalorder %s35, 0
      %p109 = por %p107, %p108
      %s111 = sadd.s32 %s110, 1
      %p114 = scmp.eq.s32.totalorder %s29, 1
      %p115 = scmp.ne.s32.totalorder %s110, %s112
      %p116 = scmp.eq.s32.totalorder %s29, 0
      %p117 = por %p115, %p116
      %p118 = scmp.ne.s32.totalorder %s110, %s112
      %p119 = scmp.eq.s32.totalorder %s34, 1
      %p120 = por %p118, %p119
      %p121 = scmp.ne.s32.totalorder %s112, %s113
      %p122 = scmp.eq.s32.totalorder %s34, 0
      %p123 = por %p121, %p122
      %p124 = scmp.ne.s32.totalorder %s112, %s113
      %p125 = scmp.eq.s32.totalorder %s35, 1
      %p126 = por %p124, %p125
      %p128 = scmp.ne.s32.totalorder %s113, %s127
      %p129 = scmp.eq.s32.totalorder %s35, 0
      %p130 = por %p128, %p129
      %s132 = sadd.s32 %s131, 1
      %p135 = scmp.eq.s32.totalorder %s29, 1
      %p136 = scmp.ne.s32.totalorder %s131, %s133
      %p137 = scmp.eq.s32.totalorder %s29, 0
      %p138 = por %p136, %p137
      %p139 = scmp.ne.s32.totalorder %s131, %s133
      %p140 = scmp.eq.s32.totalorder %s34, 1
      %p141 = por %p139, %p140
      %p142 = scmp.ne.s32.totalorder %s133, %s134
      %p143 = scmp.eq.s32.totalorder %s34, 0
      %p144 = por %p142, %p143
      %p145 = scmp.ne.s32.totalorder %s133, %s134
      %p146 = scmp.eq.s32.totalorder %s35, 1
      %p147 = por %p145, %p146
      %p149 = scmp.ne.s32.totalorder %s134, %s148
      %p150 = scmp.eq.s32.totalorder %s35, 0
      %p151 = por %p149, %p150
      %s153 = sadd.s32 %s152, 1
      %p156 = scmp.eq.s32.totalorder %s29, 1
      %p157 = scmp.ne.s32.totalorder %s152, %s154
      %p158 = scmp.eq.s32.totalorder %s29, 0
      %p159 = por %p157, %p158
      %p160 = scmp.ne.s32.totalorder %s152, %s154
      %p161 = scmp.eq.s32.totalorder %s34, 1
      %p162 = por %p160, %p161
      %p163 = scmp.ne.s32.totalorder %s154, %s155
      %p164 = scmp.eq.s32.totalorder %s34, 0
      %p165 = por %p163, %p164
      %p166 = scmp.ne.s32.totalorder %s154, %s155
      %p167 = scmp.eq.s32.totalorder %s35, 1
      %p168 = por %p166, %p167
      %p170 = scmp.ne.s32.totalorder %s155, %s169
      %p171 = scmp.eq.s32.totalorder %s35, 0
      %p172 = por %p170, %p171
      %s174 = sadd.s32 %s173, 1
      %p177 = scmp.eq.s32.totalorder %s29, 1
      %p178 = scmp.ne.s32.totalorder %s173, %s175
      %p179 = scmp.eq.s32.totalorder %s29, 0
      %p180 = por %p178, %p179
      %p181 = scmp.ne.s32.totalorder %s173, %s175
      %p182 = scmp.eq.s32.totalorder %s34, 1
      %p183 = por %p181, %p182
      %p184 = scmp.ne.s32.totalorder %s175, %s176
      %p185 = scmp.eq.s32.totalorder %s34, 0
      %p186 = por %p184, %p185
      %p187 = scmp.ne.s32.totalorder %s175, %s176
      %p188 = scmp.eq.s32.totalorder %s35, 1
      %p189 = por %p187, %p188
      %p191 = scmp.ne.s32.totalorder %s176, %s190
      %p192 = scmp.eq.s32.totalorder %s35, 0
      %p193 = por %p191, %p192
      %s195 = sadd.s32 %s194, 1
      %p198 = scmp.eq.s32.totalorder %s29, 1
      %p199 = scmp.ne.s32.totalorder %s194, %s196
      %p200 = scmp.eq.s32.totalorder %s29, 0
      %p201 = por %p199, %p200
      %p202 = scmp.ne.s32.totalorder %s194, %s196
      %p203 = scmp.eq.s32.totalorder %s34, 1
      %p204 = por %p202, %p203
      %p205 = scmp.ne.s32.totalorder %s196, %s197
      %p206 = scmp.eq.s32.totalorder %s34, 0
      %p207 = por %p205, %p206
      %p208 = scmp.ne.s32.totalorder %s196, %s197
      %p209 = scmp.eq.s32.totalorder %s35, 1
      %p210 = por %p208, %p209
      %p212 = scmp.ne.s32.totalorder %s197, %s211
      %p213 = scmp.eq.s32.totalorder %s35, 0
      %p214 = por %p212, %p213
      %s215 = ssub.s32 %s29, %s36
      %p216 = scmp.eq.s32.totalorder %s215, 0
      %s218 = sadd.s32 %s217, 1
      %s219 = scalar_select %p216, %s217, %s218
      %p222 = pneg %p216
      %p223 = scmp.eq.s32.totalorder %s29, 1
      %p224 = por %p222, %p223
      %p225 = scmp.ne.s32.totalorder %s217, %s220
      %p226 = scmp.eq.s32.totalorder %s29, 0
      %p227 = por %p225, %p226
      %p228 = scmp.ne.s32.totalorder %s217, %s220
      %p229 = scmp.eq.s32.totalorder %s34, 1
      %p230 = por %p228, %p229
      %p231 = scmp.ne.s32.totalorder %s220, %s221
      %p232 = scmp.eq.s32.totalorder %s34, 0
      %p233 = por %p231, %p232
      %p234 = scmp.ne.s32.totalorder %s220, %s221
      %p235 = scmp.eq.s32.totalorder %s35, 1
      %p236 = por %p234, %p235
      %p238 = scmp.ne.s32.totalorder %s221, %s237
      %p239 = scmp.eq.s32.totalorder %s35, 0
      %p240 = por %p238, %p239
      %s241 = ssub.s32 %s29, %s36
      %p242 = scmp.eq.s32.totalorder %s241, 0
      %s244 = sadd.s32 %s243, 1
      %s245 = scalar_select %p242, %s243, %s244
      %p248 = pneg %p242
      %p249 = scmp.eq.s32.totalorder %s29, 1
      %p250 = por %p248, %p249
      %p251 = scmp.ne.s32.totalorder %s243, %s246
      %p252 = scmp.eq.s32.totalorder %s29, 0
      %p253 = por %p251, %p252
      %p254 = scmp.ne.s32.totalorder %s243, %s246
      %p255 = scmp.eq.s32.totalorder %s34, 1
      %p256 = por %p254, %p255
      %p257 = scmp.ne.s32.totalorder %s246, %s247
      %p258 = scmp.eq.s32.totalorder %s34, 0
      %p259 = por %p257, %p258
      %p260 = scmp.ne.s32.totalorder %s246, %s247
      %p261 = scmp.eq.s32.totalorder %s35, 1
      %p262 = por %p260, %p261
      %p264 = scmp.ne.s32.totalorder %s247, %s263
      %p265 = scmp.eq.s32.totalorder %s35, 0
      %p266 = por %p264, %p265
      %s267 = ssub.s32 %s29, %s36
      %p268 = scmp.eq.s32.totalorder %s267, 0
      %s270 = sadd.s32 %s269, 1
      %s271 = scalar_select %p268, %s269, %s270
      %p274 = pneg %p268
      %p275 = scmp.eq.s32.totalorder %s29, 1
      %p276 = por %p274, %p275
      %p277 = scmp.ne.s32.totalorder %s269, %s272
      %p278 = scmp.eq.s32.totalorder %s29, 0
      %p279 = por %p277, %p278
      %p280 = scmp.ne.s32.totalorder %s269, %s272
      %p281 = scmp.eq.s32.totalorder %s34, 1
      %p282 = por %p280, %p281
      %p283 = scmp.ne.s32.totalorder %s272, %s273
      %p284 = scmp.eq.s32.totalorder %s34, 0
      %p285 = por %p283, %p284
      %p286 = scmp.ne.s32.totalorder %s272, %s273
      %p287 = scmp.eq.s32.totalorder %s35, 1
      %p288 = por %p286, %p287
      %p290 = scmp.ne.s32.totalorder %s273, %s289
      %p291 = scmp.eq.s32.totalorder %s35, 0
      %p292 = por %p290, %p291
      %s293 = ssub.s32 %s29, %s36
      %p294 = scmp.eq.s32.totalorder %s293, 0
      %s296 = sadd.s32 %s295, 1
      %s297 = scalar_select %p294, %s295, %s296
      %p300 = pneg %p294
      %p301 = scmp.eq.s32.totalorder %s29, 1
      %p302 = por %p300, %p301
      %p303 = scmp.ne.s32.totalorder %s295, %s298
      %p304 = scmp.eq.s32.totalorder %s29, 0
      %p305 = por %p303, %p304
      %p306 = scmp.ne.s32.totalorder %s295, %s298
      %p307 = scmp.eq.s32.totalorder %s34, 1
      %p308 = por %p306, %p307
      %p309 = scmp.ne.s32.totalorder %s298, %s299
      %p310 = scmp.eq.s32.totalorder %s34, 0
      %p311 = por %p309, %p310
      %p312 = scmp.ne.s32.totalorder %s298, %s299
      %p313 = scmp.eq.s32.totalorder %s35, 1
      %p314 = por %p312, %p313
      %p316 = scmp.ne.s32.totalorder %s299, %s315
      %p317 = scmp.eq.s32.totalorder %s35, 0
      %p318 = por %p316, %p317
      %s319 = ssub.s32 %s29, %s36
      %p320 = scmp.eq.s32.totalorder %s319, 0
      %s322 = sadd.s32 %s321, 1
      %s323 = scalar_select %p320, %s321, %s322
      %p326 = pneg %p320
      %p327 = scmp.eq.s32.totalorder %s29, 1
      %p328 = por %p326, %p327
      %p329 = scmp.ne.s32.totalorder %s321, %s324
      %p330 = scmp.eq.s32.totalorder %s29, 0
      %p331 = por %p329, %p330
      %p332 = scmp.ne.s32.totalorder %s321, %s324
      %p333 = scmp.eq.s32.totalorder %s34, 1
      %p334 = por %p332, %p333
      %p335 = scmp.ne.s32.totalorder %s324, %s325
      %p336 = scmp.eq.s32.totalorder %s34, 0
      %p337 = por %p335, %p336
      %p338 = scmp.ne.s32.totalorder %s324, %s325
      %p339 = scmp.eq.s32.totalorder %s35, 1
      %p340 = por %p338, %p339
      %p342 = scmp.ne.s32.totalorder %s325, %s341
      %p343 = scmp.eq.s32.totalorder %s35, 0
      %p344 = por %p342, %p343
      %p345 = scmp.le.s32.totalorder 1, %s29
      %p346 = scmp.lt.s32.totalorder %s29, 3
      %p347 = pnand %p345, %p346
      %p348 = pneg %p347
      // Predicated region
      $region9: #{tpu_custom_call.1} parent=5 // pred_check
        _
      $region10: #{tpu_custom_call.1} parent=5 // pred_check_branch
        %350 = sbr.rel (%p347) target = $region12
      $region11: #{tpu_custom_call.1} parent=5 // pred_region
        %s351 = ssub.s32 %s29, 1
        // Predicated region
        $region13: #{tpu_custom_call.1} parent=11 // pred_check
          %p352 = pneg %p102
        $region14: #{tpu_custom_call.1} parent=11 // pred_check_branch
          %354 = sbr.rel (%p352) target = $region16
        $region15: #{tpu_custom_call.1} parent=11 // pred_region
          %s356 = ssub.s32 512, 512
          %357 = vsyncadd [#allocation6], %s356
          %s358 = sshll.u32 [#allocation5], 4
          %s359 = int_to_ptr.vmem [resolvable:$true] %s358
          %364 = dma.hbm_to_vmem [thread:$0]  %s2, 512, %s359, [#allocation6], 128, 128, 8
        $region16: #{tpu_custom_call.1} parent=11 // pred_fallthru
          _
        // Predicated region
        $region17: #{tpu_custom_call.1} parent=11 // pred_check
          %p365 = pneg %p123
        $region18: #{tpu_custom_call.1} parent=11 // pred_check_branch
          %367 = sbr.rel (%p365) target = $region20
        $region19: #{tpu_custom_call.1} parent=11 // pred_region
          _
        $region20: #{tpu_custom_call.1} parent=11 // pred_fallthru
          _
        // Predicated region
        $region21: #{tpu_custom_call.1} parent=11 // pred_check
          %p368 = pneg %p144
        $region22: #{tpu_custom_call.1} parent=11 // pred_check_branch
          %370 = sbr.rel (%p368) target = $region24
        $region23: #{tpu_custom_call.1} parent=11 // pred_region
          _
        $region24: #{tpu_custom_call.1} parent=11 // pred_fallthru
          _
        // Predicated region
        $region25: #{tpu_custom_call.1} parent=11 // pred_check
          %p371 = pneg %p165
        $region26: #{tpu_custom_call.1} parent=11 // pred_check_branch
          %373 = sbr.rel (%p371) target = $region28
        $region27: #{tpu_custom_call.1} parent=11 // pred_region
          _
        $region28: #{tpu_custom_call.1} parent=11 // pred_fallthru
          _
        // Predicated region
        $region29: #{tpu_custom_call.1} parent=11 // pred_check
          %p374 = pneg %p186
        $region30: #{tpu_custom_call.1} parent=11 // pred_check_branch
          %376 = sbr.rel (%p374) target = $region32
        $region31: #{tpu_custom_call.1} parent=11 // pred_region
          _
        $region32: #{tpu_custom_call.1} parent=11 // pred_fallthru
          _
        // Predicated region
        $region33: #{tpu_custom_call.1} parent=11 // pred_check
          %p377 = pneg %p207
        $region34: #{tpu_custom_call.1} parent=11 // pred_check_branch
          %379 = sbr.rel (%p377) target = $region36
        $region35: #{tpu_custom_call.1} parent=11 // pred_region
          _
        $region36: #{tpu_custom_call.1} parent=11 // pred_fallthru
          _
      $region12: #{tpu_custom_call.1} parent=5 // pred_fallthru
        _
      %p380 = scmp.lt.s32.totalorder %s29, 2
      // Predicated region
      $region37: #{tpu_custom_call.1} parent=5 // pred_check
        %p381 = pneg %p380
      $region38: #{tpu_custom_call.1} parent=5 // pred_check_branch
        %383 = sbr.rel (%p381) target = $region40
      $region39: #{tpu_custom_call.1} parent=5 // pred_region
        // Predicated region
        $region41: #{tpu_custom_call.1} parent=39 // pred_check
          %p384 = pneg %p49
        $region42: #{tpu_custom_call.1} parent=39 // pred_check_branch
          %386 = sbr.rel (%p384) target = $region44
        $region43: #{tpu_custom_call.1} parent=39 // pred_region
          %s387 = smul.u32 8, %s29
          %p388 = scmp.lt.s32.totalorder %s387, 15
          %s389 = scalar_select %p388, %s387, 15
          %s390 = smul.addr %s389, 2
          %s391 = smul.addr %s390, 8
          %s392 = scalar_lea.vmem %s0, %s391
          %s393 = smul.u32 8, %s29
        $region44: #{tpu_custom_call.1} parent=39 // pred_fallthru
          _
        // Predicated region
        $region45: #{tpu_custom_call.1} parent=39 // pred_check
          %p394 = pneg %p75
        $region46: #{tpu_custom_call.1} parent=39 // pred_check_branch
          %396 = sbr.rel (%p394) target = $region48
        $region47: #{tpu_custom_call.1} parent=39 // pred_region
          %s397 = sand.u32 %s65, 1
          %s398 = scalar_lea.sflag [#allocation3], %s397
          %s399 = sand.u32 %s65, 1
          %s400 = smul.addr %s399, 128
          %s401 = scalar_lea.vmem [#allocation2], %s400
          %s402 = smul.u32 8, %s29
          %s404 = ssub.s32 2048, 2048
          %405 = vsyncadd %s398, %s404
          %s406 = smul.addr %s402, 2
          %s407 = smul.addr %s406, 128
          %s408 = scalar_lea.hbm %s1, %s407
          %s409 = sshll.u32 %s401, 4
          %s410 = int_to_ptr.vmem [resolvable:$true] %s409
          %415 = dma.hbm_to_vmem [thread:$0]  %s408, 2048, %s410, %s398, 128, 128, 8
        $region48: #{tpu_custom_call.1} parent=39 // pred_fallthru
          _
      $region40: #{tpu_custom_call.1} parent=5 // pred_fallthru
        _
      %p416 = scmp.le.s32.totalorder 1, %s29
      %p417 = scmp.lt.s32.totalorder %s29, 3
      %p418 = pnand %p416, %p417
      %p419 = pneg %p418
      // Predicated region
      $region49: #{tpu_custom_call.1} parent=5 // pred_check
        _
      $region50: #{tpu_custom_call.1} parent=5 // pred_check_branch
        %421 = sbr.rel (%p418) target = $region52
      $region51: #{tpu_custom_call.1} parent=5 // pred_region
        %s422 = ssub.s32 %s29, 1
        %s423 = sand.u32 %s68, 1
        %s424 = scalar_lea.sflag [#allocation3], %s423
        %s425 = sand.u32 %s68, 1
        %s426 = smul.addr %s425, 128
        %s427 = scalar_lea.vmem [#allocation2], %s426
        // Predicated region
        $region53: #{tpu_custom_call.1} parent=51 // pred_check
          %p428 = pneg %p81
        $region54: #{tpu_custom_call.1} parent=51 // pred_check_branch
          %430 = sbr.rel (%p428) target = $region56
        $region55: #{tpu_custom_call.1} parent=51 // pred_region
          %431 = dma.done %s424, 2048
        $region56: #{tpu_custom_call.1} parent=51 // pred_fallthru
          _
        // Predicated region
        $region57: #{tpu_custom_call.1} parent=51 // pred_check
          %p432 = pneg %p102
        $region58: #{tpu_custom_call.1} parent=51 // pred_check_branch
          %434 = sbr.rel (%p432) target = $region60
        $region59: #{tpu_custom_call.1} parent=51 // pred_region
          %435 = dma.done [#allocation6], 512
        $region60: #{tpu_custom_call.1} parent=51 // pred_fallthru
          _
        %s436 = smul.u32 8, %s34
        %p437 = scmp.lt.s32.totalorder %s436, 15
        %s438 = scalar_select %p437, %s436, 15
        %s439 = smul.addr %s438, 2
        %s440 = smul.addr %s439, 8
        %s441 = scalar_lea.vmem %s0, %s440
        %p442 = pneg %p55
        %p443 = pneg %p52
        %s444 = sand.u32 %s68, 1
        %s445 = scalar_lea.sflag [#allocation3], %s444
        %s446 = sand.u32 %s68, 1
        %s447 = smul.addr %s446, 128
        %s448 = scalar_lea.vmem [#allocation2], %s447
        %p449 = pneg %p81
        %p450 = pneg %p78
        %p451 = pneg %p102
        %p452 = pneg %p99
        %p453 = pneg %p123
        %p454 = pneg %p120
        %p455 = pneg %p144
        %p456 = pneg %p141
        %p457 = pneg %p165
        %p458 = pneg %p162
        %p459 = pneg %p186
        %p460 = pneg %p183
        %p461 = pneg %p207
        %p462 = pneg %p204
        %p463 = pneg %p233
        %p464 = pneg %p230
        %p465 = scmp.lt.s32.totalorder %s34, 1
        %s466 = scalar_select %p465, %s34, 1
        %s467 = smul.addr %s466, 8
        %s468 = scalar_lea.vmem %s8, %s467
        %p469 = pneg %p259
        %p470 = pneg %p256
        %p471 = scmp.lt.s32.totalorder %s34, 1
        %s472 = scalar_select %p471, %s34, 1
        %s473 = smul.addr %s472, 8
        %s474 = scalar_lea.vmem %s9, %s473
        %p475 = pneg %p285
        %p476 = pneg %p282
        %s477 = sand.u32 %s272, 1
        %s478 = scalar_lea.sflag [#allocation4], %s477
        %s479 = sand.u32 %s272, 1
        %s480 = smul.addr %s479, 128
        %s481 = scalar_lea.vmem [#allocation7], %s480
        %p482 = pneg %p311
        %p483 = pneg %p308
        %s484 = sand.u32 %s298, 1
        %s485 = scalar_lea.sflag [#allocation9], %s484
        %s486 = sand.u32 %s298, 1
        %s487 = smul.addr %s486, 8
        %s488 = scalar_lea.vmem [#allocation8], %s487
        %p489 = pneg %p337
        %p490 = pneg %p334
        %p491 = scmp.lt.s32.totalorder %s34, 1
        %s492 = scalar_select %p491, %s34, 1
        %s493 = smul.addr %s492, 8
        %s494 = scalar_lea.vmem %s12, %s493
        %s495 = smul.u32 8, %s34
        %p496 = scmp.lt.s32.totalorder %s495, 15
        %s497 = scalar_select %p496, %s495, 15
        %s498 = smul.addr %s497, 2
        %s499 = smul.addr %s498, 8
        %s500 = scalar_lea.vmem %s0, %s499
        %s501 = smul.u32 8, %s34
        %s502 = smul.u32 8, %s34
        %p503 = scmp.lt.s32.totalorder %s34, 1
        %s504 = scalar_select %p503, %s34, 1
        %s505 = smul.addr %s504, 8
        %s506 = scalar_lea.vmem %s8, %s505
        %p507 = scmp.lt.s32.totalorder %s34, 1
        %s508 = scalar_select %p507, %s34, 1
        %s509 = smul.addr %s508, 8
        %s510 = scalar_lea.vmem %s9, %s509
        %s511 = smul.u32 8, %s34
        %p512 = scmp.lt.s32.totalorder %s34, 1
        %s513 = scalar_select %p512, %s34, 1
        %s514 = smul.addr %s513, 8
        %s515 = scalar_lea.vmem %s12, %s514
        %v516 = vld [vmem:[%s500] sm:$0xff]
        %v517 = vld [vmem:[%s500 + $0x8] sm:$0xff]
        %v518 = vld [vmem:[%s500 + $0x10] sm:$0xff]
        %v519 = vld [vmem:[%s500 + $0x18] sm:$0xff]
        %v520 = vld [vmem:[%s500 + $0x20] sm:$0xff]
        %v521 = vld [vmem:[%s500 + $0x28] sm:$0xff]
        %v522 = vld [vmem:[%s500 + $0x30] sm:$0xff]
        %v523 = vld [vmem:[%s500 + $0x38] sm:$0xff]
        %v524 = vld [vmem:[%s500 + $0x40] sm:$0xff]
        %v525 = vld [vmem:[%s500 + $0x48] sm:$0xff]
        %v526 = vld [vmem:[%s500 + $0x50] sm:$0xff]
        %v527 = vld [vmem:[%s500 + $0x58] sm:$0xff]
        %v528 = vld [vmem:[%s500 + $0x60] sm:$0xff]
        %v529 = vld [vmem:[%s500 + $0x68] sm:$0xff]
        %v530 = vld [vmem:[%s500 + $0x70] sm:$0xff]
        %v531 = vld [vmem:[%s500 + $0x78] sm:$0xff]
        %v532 = vld [vmem:[#allocation5] sm:$0xff]
        %v533 = vld [vmem:[#allocation5 + $0x8] sm:$0xff]
        %v534 = vld [vmem:[#allocation5 + $0x10] sm:$0xff]
        %v535 = vld [vmem:[#allocation5 + $0x18] sm:$0xff]
        %vm536 = vcmask 261120
        %v538 = vsel %vm536, %v516, 0
        %v541 = vsel %vm536, %v517, 0
        %v544 = vsel %vm536, %v518, 0
        %v547 = vsel %vm536, %v519, 0
        %v550 = vsel %vm536, %v520, 0
        %v553 = vsel %vm536, %v521, 0
        %v556 = vsel %vm536, %v522, 0
        %v559 = vsel %vm536, %v523, 0
        %v562 = vsel %vm536, %v524, 0
        %v565 = vsel %vm536, %v525, 0
        %v568 = vsel %vm536, %v526, 0
        %v571 = vsel %vm536, %v527, 0
        %v574 = vsel %vm536, %v528, 0
        %v577 = vsel %vm536, %v529, 0
        %v580 = vsel %vm536, %v530, 0
        %v583 = vsel %vm536, %v531, 0
        %585 = vmatprep.subr.mxu0 0.0
        %586 = vmatpush1.msra.mxu0 %v532
        %587 = vmatprep.subr.mxu0 0.0
        %588 = vmatpush1.msra.mxu0 %v533
        %589 = vmatprep.subr.mxu0 0.0
        %590 = vmatpush1.msra.mxu0 %v534
        %591 = vmatprep.subr.mxu0 0.0
        %592 = vmatpush1.msra.mxu0 %v535
        %593 = vmatprep.subr.mxu0 0.0
        %594 = vmatpush1.msra.mxu0 0.0
        %595 = vmatprep.subr.mxu0 0.0
        %596 = vmatpush1.msra.mxu0 0.0
        %597 = vmatprep.subr.mxu0 0.0
        %598 = vmatpush1.msra.mxu0 0.0
        %599 = vmatprep.subr.mxu0 0.0
        %600 = vmatpush1.msra.mxu0 0.0
        %601 = vmatprep.subr.mxu0 0.0
        %602 = vmatpush1.msra.mxu0 0.0
        %603 = vmatprep.subr.mxu0 0.0
        %604 = vmatpush1.msra.mxu0 0.0
        %605 = vmatprep.subr.mxu0 0.0
        %606 = vmatpush1.msra.mxu0 0.0
        %607 = vmatprep.subr.mxu0 0.0
        %608 = vmatpush1.msra.mxu0 0.0
        %609 = vmatprep.subr.mxu0 0.0
        %610 = vmatpush1.msra.mxu0 0.0
        %611 = vmatprep.subr.mxu0 0.0
        %612 = vmatpush1.msra.mxu0 0.0
        %613 = vmatprep.subr.mxu0 0.0
        %614 = vmatpush1.msra.mxu0 0.0
        %615 = vmatprep.subr.mxu0 0.0
        %616 = vmatpush1.msra.mxu0 0.0
        %617 = vmatprep.subr.mxu0 0.0
        %618 = vmatpush1.msra.mxu0 0.0
        %619 = vmatprep.subr.mxu0 0.0
        %620 = vmatpush1.msra.mxu0 0.0
        %621 = vmatprep.subr.mxu0 0.0
        %622 = vmatpush1.msra.mxu0 0.0
        %623 = vmatprep.subr.mxu0 0.0
        %624 = vmatpush1.msra.mxu0 0.0
        %625 = vmatprep.subr.mxu0 0.0
        %626 = vmatpush1.msra.mxu0 0.0
        %627 = vmatprep.subr.mxu0 0.0
        %628 = vmatpush1.msra.mxu0 0.0
        %629 = vmatprep.subr.mxu0 0.0
        %630 = vmatpush1.msra.mxu0 0.0
        %631 = vmatprep.subr.mxu0 0.0
        %632 = vmatpush1.msra.mxu0 0.0
        %633 = vmatprep.subr.mxu0 0.0
        %634 = vmatpush1.msra.mxu0 0.0
        %635 = vmatprep.subr.mxu0 0.0
        %636 = vmatpush1.msra.mxu0 0.0
        %637 = vmatprep.subr.mxu0 0.0
        %638 = vmatpush1.msra.mxu0 0.0
        %639 = vmatprep.subr.mxu0 0.0
        %640 = vmatpush1.msra.mxu0 0.0
        %641 = vmatprep.subr.mxu0 0.0
        %642 = vmatpush1.msra.mxu0 0.0
        %643 = vmatprep.subr.mxu0 0.0
        %644 = vmatpush1.msra.mxu0 0.0
        %645 = vmatprep.subr.mxu0 0.0
        %646 = vmatpush1.msra.mxu0 0.0
        %647 = vmatprep.subr.mxu0 0.0
        %648 = vmatpush1.msra.mxu0 0.0
        %649 = vmatprep.mubr.f32.mxu0 0.0
        %650 = vmatmul.mubr.f32.gmra.mrb[0].mxu0 %v538
        %v651 = vpop.f32.mrb[0].mxu0
        %v652 = vadd.f32 0.0, %v651
        %v653 = vpop.f32.mrb[0].mxu0
        %654 = vmatprep.mubr.f32.mxu0 0.0
        %655 = vmatmul.mubr.f32.gmra.mrb[0].mxu0 %v541
        %v656 = vpop.f32.mrb[0].mxu0
        %v657 = vadd.f32 0.0, %v656
        %v658 = vpop.f32.mrb[0].mxu0
        %659 = vmatprep.mubr.f32.mxu0 0.0
        %660 = vmatmul.mubr.f32.gmra.mrb[0].mxu0 %v544
        %v661 = vpop.f32.mrb[0].mxu0
        %v662 = vadd.f32 0.0, %v661
        %v663 = vpop.f32.mrb[0].mxu0
        %664 = vmatprep.mubr.f32.mxu0 0.0
        %665 = vmatmul.mubr.f32.gmra.mrb[0].mxu0 %v547
        %v666 = vpop.f32.mrb[0].mxu0
        %v667 = vadd.f32 0.0, %v666
        %v668 = vpop.f32.mrb[0].mxu0
        %669 = vmatprep.mubr.f32.mxu0 0.0
        %670 = vmatmul.mubr.f32.gmra.mrb[0].mxu0 %v550
        %v671 = vpop.f32.mrb[0].mxu0
        %v672 = vadd.f32 0.0, %v671
        %v673 = vpop.f32.mrb[0].mxu0
        %674 = vmatprep.mubr.f32.mxu0 0.0
        %675 = vmatmul.mubr.f32.gmra.mrb[0].mxu0 %v553
        %v676 = vpop.f32.mrb[0].mxu0
        %v677 = vadd.f32 0.0, %v676
        %v678 = vpop.f32.mrb[0].mxu0
        %679 = vmatprep.mubr.f32.mxu0 0.0
        %680 = vmatmul.mubr.f32.gmra.mrb[0].mxu0 %v556
        %v681 = vpop.f32.mrb[0].mxu0
        %v682 = vadd.f32 0.0, %v681
        %v683 = vpop.f32.mrb[0].mxu0
        %684 = vmatprep.mubr.f32.mxu0 0.0
        %685 = vmatmul.mubr.f32.gmra.mrb[0].mxu0 %v559
        %v686 = vpop.f32.mrb[0].mxu0
        %v687 = vadd.f32 0.0, %v686
        %v688 = vpop.f32.mrb[0].mxu0
        %689 = vmatprep.mubr.f32.mxu0 0.0
        %690 = vmatmul.mubr.f32.gmra.mrb[0].mxu0 %v562
        %v691 = vpop.f32.mrb[0].mxu0
        %v692 = vadd.f32 0.0, %v691
        %v693 = vpop.f32.mrb[0].mxu0
        %694 = vmatprep.mubr.f32.mxu0 0.0
        %695 = vmatmul.mubr.f32.gmra.mrb[0].mxu0 %v565
        %v696 = vpop.f32.mrb[0].mxu0
        %v697 = vadd.f32 0.0, %v696
        %v698 = vpop.f32.mrb[0].mxu0
        %699 = vmatprep.mubr.f32.mxu0 0.0
        %700 = vmatmul.mubr.f32.gmra.mrb[0].mxu0 %v568
        %v701 = vpop.f32.mrb[0].mxu0
        %v702 = vadd.f32 0.0, %v701
        %v703 = vpop.f32.mrb[0].mxu0
        %704 = vmatprep.mubr.f32.mxu0 0.0
        %705 = vmatmul.mubr.f32.gmra.mrb[0].mxu0 %v571
        %v706 = vpop.f32.mrb[0].mxu0
        %v707 = vadd.f32 0.0, %v706
        %v708 = vpop.f32.mrb[0].mxu0
        %709 = vmatprep.mubr.f32.mxu0 0.0
        %710 = vmatmul.mubr.f32.gmra.mrb[0].mxu0 %v574
        %v711 = vpop.f32.mrb[0].mxu0
        %v712 = vadd.f32 0.0, %v711
        %v713 = vpop.f32.mrb[0].mxu0
        %714 = vmatprep.mubr.f32.mxu0 0.0
        %715 = vmatmul.mubr.f32.gmra.mrb[0].mxu0 %v577
        %v716 = vpop.f32.mrb[0].mxu0
        %v717 = vadd.f32 0.0, %v716
        %v718 = vpop.f32.mrb[0].mxu0
        %719 = vmatprep.mubr.f32.mxu0 0.0
        %720 = vmatmul.mubr.f32.gmra.mrb[0].mxu0 %v580
        %v721 = vpop.f32.mrb[0].mxu0
        %v722 = vadd.f32 0.0, %v721
        %v723 = vpop.f32.mrb[0].mxu0
        %724 = vmatprep.mubr.f32.mxu0 0.0
        %725 = vmatmul.mubr.f32.gmra.mrb[0].mxu0 %v583
        %v726 = vpop.f32.mrb[0].mxu0
        %v727 = vadd.f32 0.0, %v726
        %v728 = vpop.f32.mrb[0].mxu0
        %729 = vdwg.mxu0
        %v730 = vld [vmem:[%s427] sm:$0xff]
        %v731 = vld [vmem:[%s427 + $0x8] sm:$0xff]
        %v732 = vld [vmem:[%s427 + $0x10] sm:$0xff]
        %v733 = vld [vmem:[%s427 + $0x18] sm:$0xff]
        %v734 = vld [vmem:[%s427 + $0x20] sm:$0xff]
        %v735 = vld [vmem:[%s427 + $0x28] sm:$0xff]
        %v736 = vld [vmem:[%s427 + $0x30] sm:$0xff]
        %v737 = vld [vmem:[%s427 + $0x38] sm:$0xff]
        %v738 = vld [vmem:[%s427 + $0x40] sm:$0xff]
        %v739 = vld [vmem:[%s427 + $0x48] sm:$0xff]
        %v740 = vld [vmem:[%s427 + $0x50] sm:$0xff]
        %v741 = vld [vmem:[%s427 + $0x58] sm:$0xff]
        %v742 = vld [vmem:[%s427 + $0x60] sm:$0xff]
        %v743 = vld [vmem:[%s427 + $0x68] sm:$0xff]
        %v744 = vld [vmem:[%s427 + $0x70] sm:$0xff]
        %v745 = vld [vmem:[%s427 + $0x78] sm:$0xff]
        %vm746 = vcmask 130048
        %v748 = vsel %vm746, %v730, 0
        %v751 = vsel %vm746, %v731, 0
        %753 = vmatprep.subr.mxu0 0.0
        %754 = vmatpush1.msra.mxu0 %v652
        %755 = vmatprep.subr.mxu0 0.0
        %756 = vmatpush1.msra.mxu0 %v657
        %757 = vmatprep.subr.mxu0 0.0
        %758 = vmatpush1.msra.mxu0 0.0
        %759 = vmatprep.subr.mxu0 0.0
        %760 = vmatpush1.msra.mxu0 0.0
        %761 = vmatprep.subr.mxu0 0.0
        %762 = vmatpush1.msra.mxu0 0.0
        %763 = vmatprep.subr.mxu0 0.0
        %764 = vmatpush1.msra.mxu0 0.0
        %765 = vmatprep.subr.mxu0 0.0
        %766 = vmatpush1.msra.mxu0 0.0
        %767 = vmatprep.subr.mxu0 0.0
        %768 = vmatpush1.msra.mxu0 0.0
        %769 = vmatprep.subr.mxu0 0.0
        %770 = vmatpush1.msra.mxu0 0.0
        %771 = vmatprep.subr.mxu0 0.0
        %772 = vmatpush1.msra.mxu0 0.0
        %773 = vmatprep.subr.mxu0 0.0
        %774 = vmatpush1.msra.mxu0 0.0
        %775 = vmatprep.subr.mxu0 0.0
        %776 = vmatpush1.msra.mxu0 0.0
        %777 = vmatprep.subr.mxu0 0.0
        %778 = vmatpush1.msra.mxu0 0.0
        %779 = vmatprep.subr.mxu0 0.0
        %780 = vmatpush1.msra.mxu0 0.0
        %781 = vmatprep.subr.mxu0 0.0
        %782 = vmatpush1.msra.mxu0 0.0
        %783 = vmatprep.subr.mxu0 0.0
        %784 = vmatpush1.msra.mxu0 0.0
        %785 = vmatprep.subr.mxu0 0.0
        %786 = vmatpush1.msra.mxu0 0.0
        %787 = vmatprep.subr.mxu0 0.0
        %788 = vmatpush1.msra.mxu0 0.0
        %789 = vmatprep.subr.mxu0 0.0
        %790 = vmatpush1.msra.mxu0 0.0
        %791 = vmatprep.subr.mxu0 0.0
        %792 = vmatpush1.msra.mxu0 0.0
        %793 = vmatprep.subr.mxu0 0.0
        %794 = vmatpush1.msra.mxu0 0.0
        %795 = vmatprep.subr.mxu0 0.0
        %796 = vmatpush1.msra.mxu0 0.0
        %797 = vmatprep.subr.mxu0 0.0
        %798 = vmatpush1.msra.mxu0 0.0
        %799 = vmatprep.subr.mxu0 0.0
        %800 = vmatpush1.msra.mxu0 0.0
        %801 = vmatprep.subr.mxu0 0.0
        %802 = vmatpush1.msra.mxu0 0.0
        %803 = vmatprep.subr.mxu0 0.0
        %804 = vmatpush1.msra.mxu0 0.0
        %805 = vmatprep.subr.mxu0 0.0
        %806 = vmatpush1.msra.mxu0 0.0
        %807 = vmatprep.subr.mxu0 0.0
        %808 = vmatpush1.msra.mxu0 0.0
        %809 = vmatprep.subr.mxu0 0.0
        %810 = vmatpush1.msra.mxu0 0.0
        %811 = vmatprep.subr.mxu0 0.0
        %812 = vmatpush1.msra.mxu0 0.0
        %813 = vmatprep.subr.mxu0 0.0
        %814 = vmatpush1.msra.mxu0 0.0
        %815 = vmatprep.subr.mxu0 0.0
        %816 = vmatpush1.msra.mxu0 0.0
        %817 = vmatprep.mubr.f32.mxu0 0.0
        %818 = vmatmul.mubr.f32.gmra.mrb[0].mxu0 %v748
        %v819 = vpop.f32.mrb[0].mxu0
        %v820 = vadd.f32 0.0, %v819
        %v821 = vpop.f32.mrb[0].mxu0
        %822 = vmatprep.mubr.f32.mxu0 0.0
        %823 = vmatmul.mubr.f32.gmra.mrb[0].mxu0 %v751
        %v824 = vpop.f32.mrb[0].mxu0
        %v825 = vadd.f32 0.0, %v824
        %v826 = vpop.f32.mrb[0].mxu0
        %827 = vdwg.mxu0
        %v829 = vsel %vm746, %v732, 0
        %v832 = vsel %vm746, %v733, 0
        %834 = vmatprep.subr.mxu0 0.0
        %835 = vmatpush1.msra.mxu0 %v662
        %836 = vmatprep.subr.mxu0 0.0
        %837 = vmatpush1.msra.mxu0 %v667
        %838 = vmatprep.subr.mxu0 0.0
        %839 = vmatpush1.msra.mxu0 0.0
        %840 = vmatprep.subr.mxu0 0.0
        %841 = vmatpush1.msra.mxu0 0.0
        %842 = vmatprep.subr.mxu0 0.0
        %843 = vmatpush1.msra.mxu0 0.0
        %844 = vmatprep.subr.mxu0 0.0
        %845 = vmatpush1.msra.mxu0 0.0
        %846 = vmatprep.subr.mxu0 0.0
        %847 = vmatpush1.msra.mxu0 0.0
        %848 = vmatprep.subr.mxu0 0.0
        %849 = vmatpush1.msra.mxu0 0.0
        %850 = vmatprep.subr.mxu0 0.0
        %851 = vmatpush1.msra.mxu0 0.0
        %852 = vmatprep.subr.mxu0 0.0
        %853 = vmatpush1.msra.mxu0 0.0
        %854 = vmatprep.subr.mxu0 0.0
        %855 = vmatpush1.msra.mxu0 0.0
        %856 = vmatprep.subr.mxu0 0.0
        %857 = vmatpush1.msra.mxu0 0.0
        %858 = vmatprep.subr.mxu0 0.0
        %859 = vmatpush1.msra.mxu0 0.0
        %860 = vmatprep.subr.mxu0 0.0
        %861 = vmatpush1.msra.mxu0 0.0
        %862 = vmatprep.subr.mxu0 0.0
        %863 = vmatpush1.msra.mxu0 0.0
        %864 = vmatprep.subr.mxu0 0.0
        %865 = vmatpush1.msra.mxu0 0.0
        %866 = vmatprep.subr.mxu0 0.0
        %867 = vmatpush1.msra.mxu0 0.0
        %868 = vmatprep.subr.mxu0 0.0
        %869 = vmatpush1.msra.mxu0 0.0
        %870 = vmatprep.subr.mxu0 0.0
        %871 = vmatpush1.msra.mxu0 0.0
        %872 = vmatprep.subr.mxu0 0.0
        %873 = vmatpush1.msra.mxu0 0.0
        %874 = vmatprep.subr.mxu0 0.0
        %875 = vmatpush1.msra.mxu0 0.0
        %876 = vmatprep.subr.mxu0 0.0
        %877 = vmatpush1.msra.mxu0 0.0
        %878 = vmatprep.subr.mxu0 0.0
        %879 = vmatpush1.msra.mxu0 0.0
        %880 = vmatprep.subr.mxu0 0.0
        %881 = vmatpush1.msra.mxu0 0.0
        %882 = vmatprep.subr.mxu0 0.0
        %883 = vmatpush1.msra.mxu0 0.0
        %884 = vmatprep.subr.mxu0 0.0
        %885 = vmatpush1.msra.mxu0 0.0
        %886 = vmatprep.subr.mxu0 0.0
        %887 = vmatpush1.msra.mxu0 0.0
        %888 = vmatprep.subr.mxu0 0.0
        %889 = vmatpush1.msra.mxu0 0.0
        %890 = vmatprep.subr.mxu0 0.0
        %891 = vmatpush1.msra.mxu0 0.0
        %892 = vmatprep.subr.mxu0 0.0
        %893 = vmatpush1.msra.mxu0 0.0
        %894 = vmatprep.subr.mxu0 0.0
        %895 = vmatpush1.msra.mxu0 0.0
        %896 = vmatprep.subr.mxu0 0.0
        %897 = vmatpush1.msra.mxu0 0.0
        %898 = vmatprep.mubr.f32.mxu0 0.0
        %899 = vmatmul.mubr.f32.gmra.mrb[0].mxu0 %v829
        %v900 = vpop.f32.mrb[0].mxu0
        %v901 = vadd.f32 0.0, %v900
        %v902 = vpop.f32.mrb[0].mxu0
        %903 = vmatprep.mubr.f32.mxu0 0.0
        %904 = vmatmul.mubr.f32.gmra.mrb[0].mxu0 %v832
        %v905 = vpop.f32.mrb[0].mxu0
        %v906 = vadd.f32 0.0, %v905
        %v907 = vpop.f32.mrb[0].mxu0
        %908 = vdwg.mxu0
        %v910 = vsel %vm746, %v734, 0
        %v913 = vsel %vm746, %v735, 0
        %915 = vmatprep.subr.mxu0 0.0
        %916 = vmatpush1.msra.mxu0 %v672
        %917 = vmatprep.subr.mxu0 0.0
        %918 = vmatpush1.msra.mxu0 %v677
        %919 = vmatprep.subr.mxu0 0.0
        %920 = vmatpush1.msra.mxu0 0.0
        %921 = vmatprep.subr.mxu0 0.0
        %922 = vmatpush1.msra.mxu0 0.0
        %923 = vmatprep.subr.mxu0 0.0
        %924 = vmatpush1.msra.mxu0 0.0
        %925 = vmatprep.subr.mxu0 0.0
        %926 = vmatpush1.msra.mxu0 0.0
        %927 = vmatprep.subr.mxu0 0.0
        %928 = vmatpush1.msra.mxu0 0.0
        %929 = vmatprep.subr.mxu0 0.0
        %930 = vmatpush1.msra.mxu0 0.0
        %931 = vmatprep.subr.mxu0 0.0
        %932 = vmatpush1.msra.mxu0 0.0
        %933 = vmatprep.subr.mxu0 0.0
        %934 = vmatpush1.msra.mxu0 0.0
        %935 = vmatprep.subr.mxu0 0.0
        %936 = vmatpush1.msra.mxu0 0.0
        %937 = vmatprep.subr.mxu0 0.0
        %938 = vmatpush1.msra.mxu0 0.0
        %939 = vmatprep.subr.mxu0 0.0
        %940 = vmatpush1.msra.mxu0 0.0
        %941 = vmatprep.subr.mxu0 0.0
        %942 = vmatpush1.msra.mxu0 0.0
        %943 = vmatprep.subr.mxu0 0.0
        %944 = vmatpush1.msra.mxu0 0.0
        %945 = vmatprep.subr.mxu0 0.0
        %946 = vmatpush1.msra.mxu0 0.0
        %947 = vmatprep.subr.mxu0 0.0
        %948 = vmatpush1.msra.mxu0 0.0
        %949 = vmatprep.subr.mxu0 0.0
        %950 = vmatpush1.msra.mxu0 0.0
        %951 = vmatprep.subr.mxu0 0.0
        %952 = vmatpush1.msra.mxu0 0.0
        %953 = vmatprep.subr.mxu0 0.0
        %954 = vmatpush1.msra.mxu0 0.0
        %955 = vmatprep.subr.mxu0 0.0
        %956 = vmatpush1.msra.mxu0 0.0
        %957 = vmatprep.subr.mxu0 0.0
        %958 = vmatpush1.msra.mxu0 0.0
        %959 = vmatprep.subr.mxu0 0.0
        %960 = vmatpush1.msra.mxu0 0.0
        %961 = vmatprep.subr.mxu0 0.0
        %962 = vmatpush1.msra.mxu0 0.0
        %963 = vmatprep.subr.mxu0 0.0
        %964 = vmatpush1.msra.mxu0 0.0
        %965 = vmatprep.subr.mxu0 0.0
        %966 = vmatpush1.msra.mxu0 0.0
        %967 = vmatprep.subr.mxu0 0.0
        %968 = vmatpush1.msra.mxu0 0.0
        %969 = vmatprep.subr.mxu0 0.0
        %970 = vmatpush1.msra.mxu0 0.0
        %971 = vmatprep.subr.mxu0 0.0
        %972 = vmatpush1.msra.mxu0 0.0
        %973 = vmatprep.subr.mxu0 0.0
        %974 = vmatpush1.msra.mxu0 0.0
        %975 = vmatprep.subr.mxu0 0.0
        %976 = vmatpush1.msra.mxu0 0.0
        %977 = vmatprep.subr.mxu0 0.0
        %978 = vmatpush1.msra.mxu0 0.0
        %979 = vmatprep.mubr.f32.mxu0 0.0
        %980 = vmatmul.mubr.f32.gmra.mrb[0].mxu0 %v910
        %v981 = vpop.f32.mrb[0].mxu0
        %v982 = vadd.f32 0.0, %v981
        %v983 = vpop.f32.mrb[0].mxu0
        %984 = vmatprep.mubr.f32.mxu0 0.0
        %985 = vmatmul.mubr.f32.gmra.mrb[0].mxu0 %v913
        %v986 = vpop.f32.mrb[0].mxu0
        %v987 = vadd.f32 0.0, %v986
        %v988 = vpop.f32.mrb[0].mxu0
        %989 = vdwg.mxu0
        %v991 = vsel %vm746, %v736, 0
        %v994 = vsel %vm746, %v737, 0
        %996 = vmatprep.subr.mxu0 0.0
        %997 = vmatpush1.msra.mxu0 %v682
        %998 = vmatprep.subr.mxu0 0.0
        %999 = vmatpush1.msra.mxu0 %v687
        %1000 = vmatprep.subr.mxu0 0.0
        %1001 = vmatpush1.msra.mxu0 0.0
        %1002 = vmatprep.subr.mxu0 0.0
        %1003 = vmatpush1.msra.mxu0 0.0
        %1004 = vmatprep.subr.mxu0 0.0
        %1005 = vmatpush1.msra.mxu0 0.0
        %1006 = vmatprep.subr.mxu0 0.0
        %1007 = vmatpush1.msra.mxu0 0.0
        %1008 = vmatprep.subr.mxu0 0.0
        %1009 = vmatpush1.msra.mxu0 0.0
        %1010 = vmatprep.subr.mxu0 0.0
        %1011 = vmatpush1.msra.mxu0 0.0
        %1012 = vmatprep.subr.mxu0 0.0
        %1013 = vmatpush1.msra.mxu0 0.0
        %1014 = vmatprep.subr.mxu0 0.0
        %1015 = vmatpush1.msra.mxu0 0.0
        %1016 = vmatprep.subr.mxu0 0.0
        %1017 = vmatpush1.msra.mxu0 0.0
        %1018 = vmatprep.subr.mxu0 0.0
        %1019 = vmatpush1.msra.mxu0 0.0
        %1020 = vmatprep.subr.mxu0 0.0
        %1021 = vmatpush1.msra.mxu0 0.0
        %1022 = vmatprep.subr.mxu0 0.0
        %1023 = vmatpush1.msra.mxu0 0.0
        %1024 = vmatprep.subr.mxu0 0.0
        %1025 = vmatpush1.msra.mxu0 0.0
        %1026 = vmatprep.subr.mxu0 0.0
        %1027 = vmatpush1.msra.mxu0 0.0
        %1028 = vmatprep.subr.mxu0 0.0
        %1029 = vmatpush1.msra.mxu0 0.0
        %1030 = vmatprep.subr.mxu0 0.0
        %1031 = vmatpush1.msra.mxu0 0.0
        %1032 = vmatprep.subr.mxu0 0.0
        %1033 = vmatpush1.msra.mxu0 0.0
        %1034 = vmatprep.subr.mxu0 0.0
        %1035 = vmatpush1.msra.mxu0 0.0
        %1036 = vmatprep.subr.mxu0 0.0
        %1037 = vmatpush1.msra.mxu0 0.0
        %1038 = vmatprep.subr.mxu0 0.0
        %1039 = vmatpush1.msra.mxu0 0.0
        %1040 = vmatprep.subr.mxu0 0.0
        %1041 = vmatpush1.msra.mxu0 0.0
        %1042 = vmatprep.subr.mxu0 0.0
        %1043 = vmatpush1.msra.mxu0 0.0
        %1044 = vmatprep.subr.mxu0 0.0
        %1045 = vmatpush1.msra.mxu0 0.0
        %1046 = vmatprep.subr.mxu0 0.0
        %1047 = vmatpush1.msra.mxu0 0.0
        %1048 = vmatprep.subr.mxu0 0.0
        %1049 = vmatpush1.msra.mxu0 0.0
        %1050 = vmatprep.subr.mxu0 0.0
        %1051 = vmatpush1.msra.mxu0 0.0
        %1052 = vmatprep.subr.mxu0 0.0
        %1053 = vmatpush1.msra.mxu0 0.0
        %1054 = vmatprep.subr.mxu0 0.0
        %1055 = vmatpush1.msra.mxu0 0.0
        %1056 = vmatprep.subr.mxu0 0.0
        %1057 = vmatpush1.msra.mxu0 0.0
        %1058 = vmatprep.subr.mxu0 0.0
        %1059 = vmatpush1.msra.mxu0 0.0
        %1060 = vmatprep.mubr.f32.mxu0 0.0
        %1061 = vmatmul.mubr.f32.gmra.mrb[0].mxu0 %v991
        %v1062 = vpop.f32.mrb[0].mxu0
        %v1063 = vadd.f32 0.0, %v1062
        %v1064 = vpop.f32.mrb[0].mxu0
        %1065 = vmatprep.mubr.f32.mxu0 0.0
        %1066 = vmatmul.mubr.f32.gmra.mrb[0].mxu0 %v994
        %v1067 = vpop.f32.mrb[0].mxu0
        %v1068 = vadd.f32 0.0, %v1067
        %v1069 = vpop.f32.mrb[0].mxu0
        %1070 = vdwg.mxu0
        %v1072 = vsel %vm746, %v738, 0
        %v1075 = vsel %vm746, %v739, 0
        %1077 = vmatprep.subr.mxu0 0.0
        %1078 = vmatpush1.msra.mxu0 %v692
        %1079 = vmatprep.subr.mxu0 0.0
        %1080 = vmatpush1.msra.mxu0 %v697
        %1081 = vmatprep.subr.mxu0 0.0
        %1082 = vmatpush1.msra.mxu0 0.0
        %1083 = vmatprep.subr.mxu0 0.0
        %1084 = vmatpush1.msra.mxu0 0.0
        %1085 = vmatprep.subr.mxu0 0.0
        %1086 = vmatpush1.msra.mxu0 0.0
        %1087 = vmatprep.subr.mxu0 0.0
        %1088 = vmatpush1.msra.mxu0 0.0
        %1089 = vmatprep.subr.mxu0 0.0
        %1090 = vmatpush1.msra.mxu0 0.0
        %1091 = vmatprep.subr.mxu0 0.0
        %1092 = vmatpush1.msra.mxu0 0.0
        %1093 = vmatprep.subr.mxu0 0.0
        %1094 = vmatpush1.msra.mxu0 0.0
        %1095 = vmatprep.subr.mxu0 0.0
        %1096 = vmatpush1.msra.mxu0 0.0
        %1097 = vmatprep.subr.mxu0 0.0
        %1098 = vmatpush1.msra.mxu0 0.0
        %1099 = vmatprep.subr.mxu0 0.0
        %1100 = vmatpush1.msra.mxu0 0.0
        %1101 = vmatprep.subr.mxu0 0.0
        %1102 = vmatpush1.msra.mxu0 0.0
        %1103 = vmatprep.subr.mxu0 0.0
        %1104 = vmatpush1.msra.mxu0 0.0
        %1105 = vmatprep.subr.mxu0 0.0
        %1106 = vmatpush1.msra.mxu0 0.0
        %1107 = vmatprep.subr.mxu0 0.0
        %1108 = vmatpush1.msra.mxu0 0.0
        %1109 = vmatprep.subr.mxu0 0.0
        %1110 = vmatpush1.msra.mxu0 0.0
        %1111 = vmatprep.subr.mxu0 0.0
        %1112 = vmatpush1.msra.mxu0 0.0
        %1113 = vmatprep.subr.mxu0 0.0
        %1114 = vmatpush1.msra.mxu0 0.0
        %1115 = vmatprep.subr.mxu0 0.0
        %1116 = vmatpush1.msra.mxu0 0.0
        %1117 = vmatprep.subr.mxu0 0.0
        %1118 = vmatpush1.msra.mxu0 0.0
        %1119 = vmatprep.subr.mxu0 0.0
        %1120 = vmatpush1.msra.mxu0 0.0
        %1121 = vmatprep.subr.mxu0 0.0
        %1122 = vmatpush1.msra.mxu0 0.0
        %1123 = vmatprep.subr.mxu0 0.0
        %1124 = vmatpush1.msra.mxu0 0.0
        %1125 = vmatprep.subr.mxu0 0.0
        %1126 = vmatpush1.msra.mxu0 0.0
        %1127 = vmatprep.subr.mxu0 0.0
        %1128 = vmatpush1.msra.mxu0 0.0
        %1129 = vmatprep.subr.mxu0 0.0
        %1130 = vmatpush1.msra.mxu0 0.0
        %1131 = vmatprep.subr.mxu0 0.0
        %1132 = vmatpush1.msra.mxu0 0.0
        %1133 = vmatprep.subr.mxu0 0.0
        %1134 = vmatpush1.msra.mxu0 0.0
        %1135 = vmatprep.subr.mxu0 0.0
        %1136 = vmatpush1.msra.mxu0 0.0
        %1137 = vmatprep.subr.mxu0 0.0
        %1138 = vmatpush1.msra.mxu0 0.0
        %1139 = vmatprep.subr.mxu0 0.0
        %1140 = vmatpush1.msra.mxu0 0.0
        %1141 = vmatprep.mubr.f32.mxu0 0.0
        %1142 = vmatmul.mubr.f32.gmra.mrb[0].mxu0 %v1072
        %v1143 = vpop.f32.mrb[0].mxu0
        %v1144 = vadd.f32 0.0, %v1143
        %v1145 = vpop.f32.mrb[0].mxu0
        %1146 = vmatprep.mubr.f32.mxu0 0.0
        %1147 = vmatmul.mubr.f32.gmra.mrb[0].mxu0 %v1075
        %v1148 = vpop.f32.mrb[0].mxu0
        %v1149 = vadd.f32 0.0, %v1148
        %v1150 = vpop.f32.mrb[0].mxu0
        %1151 = vdwg.mxu0
        %v1153 = vsel %vm746, %v740, 0
        %v1156 = vsel %vm746, %v741, 0
        %1158 = vmatprep.subr.mxu0 0.0
        %1159 = vmatpush1.msra.mxu0 %v702
        %1160 = vmatprep.subr.mxu0 0.0
        %1161 = vmatpush1.msra.mxu0 %v707
        %1162 = vmatprep.subr.mxu0 0.0
        %1163 = vmatpush1.msra.mxu0 0.0
        %1164 = vmatprep.subr.mxu0 0.0
        %1165 = vmatpush1.msra.mxu0 0.0
        %1166 = vmatprep.subr.mxu0 0.0
        %1167 = vmatpush1.msra.mxu0 0.0
        %1168 = vmatprep.subr.mxu0 0.0
        %1169 = vmatpush1.msra.mxu0 0.0
        %1170 = vmatprep.subr.mxu0 0.0
        %1171 = vmatpush1.msra.mxu0 0.0
        %1172 = vmatprep.subr.mxu0 0.0
        %1173 = vmatpush1.msra.mxu0 0.0
        %1174 = vmatprep.subr.mxu0 0.0
        %1175 = vmatpush1.msra.mxu0 0.0
        %1176 = vmatprep.subr.mxu0 0.0
        %1177 = vmatpush1.msra.mxu0 0.0
        %1178 = vmatprep.subr.mxu0 0.0
        %1179 = vmatpush1.msra.mxu0 0.0
        %1180 = vmatprep.subr.mxu0 0.0
        %1181 = vmatpush1.msra.mxu0 0.0
        %1182 = vmatprep.subr.mxu0 0.0
        %1183 = vmatpush1.msra.mxu0 0.0
        %1184 = vmatprep.subr.mxu0 0.0
        %1185 = vmatpush1.msra.mxu0 0.0
        %1186 = vmatprep.subr.mxu0 0.0
        %1187 = vmatpush1.msra.mxu0 0.0
        %1188 = vmatprep.subr.mxu0 0.0
        %1189 = vmatpush1.msra.mxu0 0.0
        %1190 = vmatprep.subr.mxu0 0.0
        %1191 = vmatpush1.msra.mxu0 0.0
        %1192 = vmatprep.subr.mxu0 0.0
        %1193 = vmatpush1.msra.mxu0 0.0
        %1194 = vmatprep.subr.mxu0 0.0
        %1195 = vmatpush1.msra.mxu0 0.0
        %1196 = vmatprep.subr.mxu0 0.0
        %1197 = vmatpush1.msra.mxu0 0.0
        %1198 = vmatprep.subr.mxu0 0.0
        %1199 = vmatpush1.msra.mxu0 0.0
        %1200 = vmatprep.subr.mxu0 0.0
        %1201 = vmatpush1.msra.mxu0 0.0
        %1202 = vmatprep.subr.mxu0 0.0
        %1203 = vmatpush1.msra.mxu0 0.0
        %1204 = vmatprep.subr.mxu0 0.0
        %1205 = vmatpush1.msra.mxu0 0.0
        %1206 = vmatprep.subr.mxu0 0.0
        %1207 = vmatpush1.msra.mxu0 0.0
        %1208 = vmatprep.subr.mxu0 0.0
        %1209 = vmatpush1.msra.mxu0 0.0
        %1210 = vmatprep.subr.mxu0 0.0
        %1211 = vmatpush1.msra.mxu0 0.0
        %1212 = vmatprep.subr.mxu0 0.0
        %1213 = vmatpush1.msra.mxu0 0.0
        %1214 = vmatprep.subr.mxu0 0.0
        %1215 = vmatpush1.msra.mxu0 0.0
        %1216 = vmatprep.subr.mxu0 0.0
        %1217 = vmatpush1.msra.mxu0 0.0
        %1218 = vmatprep.subr.mxu0 0.0
        %1219 = vmatpush1.msra.mxu0 0.0
        %1220 = vmatprep.subr.mxu0 0.0
        %1221 = vmatpush1.msra.mxu0 0.0
        %1222 = vmatprep.mubr.f32.mxu0 0.0
        %1223 = vmatmul.mubr.f32.gmra.mrb[0].mxu0 %v1153
        %v1224 = vpop.f32.mrb[0].mxu0
        %v1225 = vadd.f32 0.0, %v1224
        %v1226 = vpop.f32.mrb[0].mxu0
        %1227 = vmatprep.mubr.f32.mxu0 0.0
        %1228 = vmatmul.mubr.f32.gmra.mrb[0].mxu0 %v1156
        %v1229 = vpop.f32.mrb[0].mxu0
        %v1230 = vadd.f32 0.0, %v1229
        %v1231 = vpop.f32.mrb[0].mxu0
        %1232 = vdwg.mxu0
        %v1234 = vsel %vm746, %v742, 0
        %v1237 = vsel %vm746, %v743, 0
        %1239 = vmatprep.subr.mxu0 0.0
        %1240 = vmatpush1.msra.mxu0 %v712
        %1241 = vmatprep.subr.mxu0 0.0
        %1242 = vmatpush1.msra.mxu0 %v717
        %1243 = vmatprep.subr.mxu0 0.0
        %1244 = vmatpush1.msra.mxu0 0.0
        %1245 = vmatprep.subr.mxu0 0.0
        %1246 = vmatpush1.msra.mxu0 0.0
        %1247 = vmatprep.subr.mxu0 0.0
        %1248 = vmatpush1.msra.mxu0 0.0
        %1249 = vmatprep.subr.mxu0 0.0
        %1250 = vmatpush1.msra.mxu0 0.0
        %1251 = vmatprep.subr.mxu0 0.0
        %1252 = vmatpush1.msra.mxu0 0.0
        %1253 = vmatprep.subr.mxu0 0.0
        %1254 = vmatpush1.msra.mxu0 0.0
        %1255 = vmatprep.subr.mxu0 0.0
        %1256 = vmatpush1.msra.mxu0 0.0
        %1257 = vmatprep.subr.mxu0 0.0
        %1258 = vmatpush1.msra.mxu0 0.0
        %1259 = vmatprep.subr.mxu0 0.0
        %1260 = vmatpush1.msra.mxu0 0.0
        %1261 = vmatprep.subr.mxu0 0.0
        %1262 = vmatpush1.msra.mxu0 0.0
        %1263 = vmatprep.subr.mxu0 0.0
        %1264 = vmatpush1.msra.mxu0 0.0
        %1265 = vmatprep.subr.mxu0 0.0
        %1266 = vmatpush1.msra.mxu0 0.0
        %1267 = vmatprep.subr.mxu0 0.0
        %1268 = vmatpush1.msra.mxu0 0.0
        %1269 = vmatprep.subr.mxu0 0.0
        %1270 = vmatpush1.msra.mxu0 0.0
        %1271 = vmatprep.subr.mxu0 0.0
        %1272 = vmatpush1.msra.mxu0 0.0
        %1273 = vmatprep.subr.mxu0 0.0
        %1274 = vmatpush1.msra.mxu0 0.0
        %1275 = vmatprep.subr.mxu0 0.0
        %1276 = vmatpush1.msra.mxu0 0.0
        %1277 = vmatprep.subr.mxu0 0.0
        %1278 = vmatpush1.msra.mxu0 0.0
        %1279 = vmatprep.subr.mxu0 0.0
        %1280 = vmatpush1.msra.mxu0 0.0
        %1281 = vmatprep.subr.mxu0 0.0
        %1282 = vmatpush1.msra.mxu0 0.0
        %1283 = vmatprep.subr.mxu0 0.0
        %1284 = vmatpush1.msra.mxu0 0.0
        %1285 = vmatprep.subr.mxu0 0.0
        %1286 = vmatpush1.msra.mxu0 0.0
        %1287 = vmatprep.subr.mxu0 0.0
        %1288 = vmatpush1.msra.mxu0 0.0
        %1289 = vmatprep.subr.mxu0 0.0
        %1290 = vmatpush1.msra.mxu0 0.0
        %1291 = vmatprep.subr.mxu0 0.0
        %1292 = vmatpush1.msra.mxu0 0.0
        %1293 = vmatprep.subr.mxu0 0.0
        %1294 = vmatpush1.msra.mxu0 0.0
        %1295 = vmatprep.subr.mxu0 0.0
        %1296 = vmatpush1.msra.mxu0 0.0
        %1297 = vmatprep.subr.mxu0 0.0
        %1298 = vmatpush1.msra.mxu0 0.0
        %1299 = vmatprep.subr.mxu0 0.0
        %1300 = vmatpush1.msra.mxu0 0.0
        %1301 = vmatprep.subr.mxu0 0.0
        %1302 = vmatpush1.msra.mxu0 0.0
        %1303 = vmatprep.mubr.f32.mxu0 0.0
        %1304 = vmatmul.mubr.f32.gmra.mrb[0].mxu0 %v1234
        %v1305 = vpop.f32.mrb[0].mxu0
        %v1306 = vadd.f32 0.0, %v1305
        %v1307 = vpop.f32.mrb[0].mxu0
        %1308 = vmatprep.mubr.f32.mxu0 0.0
        %1309 = vmatmul.mubr.f32.gmra.mrb[0].mxu0 %v1237
        %v1310 = vpop.f32.mrb[0].mxu0
        %v1311 = vadd.f32 0.0, %v1310
        %v1312 = vpop.f32.mrb[0].mxu0
        %1313 = vdwg.mxu0
        %v1315 = vsel %vm746, %v744, 0
        %v1318 = vsel %vm746, %v745, 0
        %1320 = vmatprep.subr.mxu0 0.0
        %1321 = vmatpush1.msra.mxu0 %v722
        %1322 = vmatprep.subr.mxu0 0.0
        %1323 = vmatpush1.msra.mxu0 %v727
        %1324 = vmatprep.subr.mxu0 0.0
        %1325 = vmatpush1.msra.mxu0 0.0
        %1326 = vmatprep.subr.mxu0 0.0
        %1327 = vmatpush1.msra.mxu0 0.0
        %1328 = vmatprep.subr.mxu0 0.0
        %1329 = vmatpush1.msra.mxu0 0.0
        %1330 = vmatprep.subr.mxu0 0.0
        %1331 = vmatpush1.msra.mxu0 0.0
        %1332 = vmatprep.subr.mxu0 0.0
        %1333 = vmatpush1.msra.mxu0 0.0
        %1334 = vmatprep.subr.mxu0 0.0
        %1335 = vmatpush1.msra.mxu0 0.0
        %1336 = vmatprep.subr.mxu0 0.0
        %1337 = vmatpush1.msra.mxu0 0.0
        %1338 = vmatprep.subr.mxu0 0.0
        %1339 = vmatpush1.msra.mxu0 0.0
        %1340 = vmatprep.subr.mxu0 0.0
        %1341 = vmatpush1.msra.mxu0 0.0
        %1342 = vmatprep.subr.mxu0 0.0
        %1343 = vmatpush1.msra.mxu0 0.0
        %1344 = vmatprep.subr.mxu0 0.0
        %1345 = vmatpush1.msra.mxu0 0.0
        %1346 = vmatprep.subr.mxu0 0.0
        %1347 = vmatpush1.msra.mxu0 0.0
        %1348 = vmatprep.subr.mxu0 0.0
        %1349 = vmatpush1.msra.mxu0 0.0
        %1350 = vmatprep.subr.mxu0 0.0
        %1351 = vmatpush1.msra.mxu0 0.0
        %1352 = vmatprep.subr.mxu0 0.0
        %1353 = vmatpush1.msra.mxu0 0.0
        %1354 = vmatprep.subr.mxu0 0.0
        %1355 = vmatpush1.msra.mxu0 0.0
        %1356 = vmatprep.subr.mxu0 0.0
        %1357 = vmatpush1.msra.mxu0 0.0
        %1358 = vmatprep.subr.mxu0 0.0
        %1359 = vmatpush1.msra.mxu0 0.0
        %1360 = vmatprep.subr.mxu0 0.0
        %1361 = vmatpush1.msra.mxu0 0.0
        %1362 = vmatprep.subr.mxu0 0.0
        %1363 = vmatpush1.msra.mxu0 0.0
        %1364 = vmatprep.subr.mxu0 0.0
        %1365 = vmatpush1.msra.mxu0 0.0
        %1366 = vmatprep.subr.mxu0 0.0
        %1367 = vmatpush1.msra.mxu0 0.0
        %1368 = vmatprep.subr.mxu0 0.0
        %1369 = vmatpush1.msra.mxu0 0.0
        %1370 = vmatprep.subr.mxu0 0.0
        %1371 = vmatpush1.msra.mxu0 0.0
        %1372 = vmatprep.subr.mxu0 0.0
        %1373 = vmatpush1.msra.mxu0 0.0
        %1374 = vmatprep.subr.mxu0 0.0
        %1375 = vmatpush1.msra.mxu0 0.0
        %1376 = vmatprep.subr.mxu0 0.0
        %1377 = vmatpush1.msra.mxu0 0.0
        %1378 = vmatprep.subr.mxu0 0.0
        %1379 = vmatpush1.msra.mxu0 0.0
        %1380 = vmatprep.subr.mxu0 0.0
        %1381 = vmatpush1.msra.mxu0 0.0
        %1382 = vmatprep.subr.mxu0 0.0
        %1383 = vmatpush1.msra.mxu0 0.0
        %1384 = vmatprep.mubr.f32.mxu0 0.0
        %1385 = vmatmul.mubr.f32.gmra.mrb[0].mxu0 %v1315
        %v1386 = vpop.f32.mrb[0].mxu0
        %v1387 = vadd.f32 0.0, %v1386
        %v1388 = vpop.f32.mrb[0].mxu0
        %1389 = vmatprep.mubr.f32.mxu0 0.0
        %1390 = vmatmul.mubr.f32.gmra.mrb[0].mxu0 %v1318
        %v1391 = vpop.f32.mrb[0].mxu0
        %v1392 = vadd.f32 0.0, %v1391
        %v1393 = vpop.f32.mrb[0].mxu0
        %1394 = vdwg.mxu0
        %v1395 = vmax.f32 %v820, 0.0
        %v1396 = vmax.f32 %v825, 0.0
        %v1397 = vmax.f32 %v901, 0.0
        %v1398 = vmax.f32 %v906, 0.0
        %v1399 = vmax.f32 %v982, 0.0
        %v1400 = vmax.f32 %v987, 0.0
        %v1401 = vmax.f32 %v1063, 0.0
        %v1402 = vmax.f32 %v1068, 0.0
        %v1403 = vmax.f32 %v1144, 0.0
        %v1404 = vmax.f32 %v1149, 0.0
        %v1405 = vmax.f32 %v1225, 0.0
        %v1406 = vmax.f32 %v1230, 0.0
        %v1407 = vmax.f32 %v1306, 0.0
        %v1408 = vmax.f32 %v1311, 0.0
        %v1409 = vmax.f32 %v1387, 0.0
        %v1410 = vmax.f32 %v1392, 0.0
        %1411 = vst [vmem:[%s481] sm:$0xff] %v1395
        %1412 = vst [vmem:[%s481 + $0x8] sm:$0xff] %v1396
        %1413 = vst [vmem:[%s481 + $0x10] sm:$0xff] %v1397
        %1414 = vst [vmem:[%s481 + $0x18] sm:$0xff] %v1398
        %1415 = vst [vmem:[%s481 + $0x20] sm:$0xff] %v1399
        %1416 = vst [vmem:[%s481 + $0x28] sm:$0xff] %v1400
        %1417 = vst [vmem:[%s481 + $0x30] sm:$0xff] %v1401
        %1418 = vst [vmem:[%s481 + $0x38] sm:$0xff] %v1402
        %1419 = vst [vmem:[%s481 + $0x40] sm:$0xff] %v1403
        %1420 = vst [vmem:[%s481 + $0x48] sm:$0xff] %v1404
        %1421 = vst [vmem:[%s481 + $0x50] sm:$0xff] %v1405
        %1422 = vst [vmem:[%s481 + $0x58] sm:$0xff] %v1406
        %1423 = vst [vmem:[%s481 + $0x60] sm:$0xff] %v1407
        %1424 = vst [vmem:[%s481 + $0x68] sm:$0xff] %v1408
        %1425 = vst [vmem:[%s481 + $0x70] sm:$0xff] %v1409
        %1426 = vst [vmem:[%s481 + $0x78] sm:$0xff] %v1410
        %v1427 = vld [vmem:[%s7] sm:$0xff]
        %1428 = vmatprep.subr.mxu0 0.0
        %1429 = vmatpush1.msra.mxu0 %v1395
        %1430 = vmatprep.subr.mxu0 0.0
        %1431 = vmatpush1.msra.mxu0 %v1396
        %1432 = vmatprep.subr.mxu0 0.0
        %1433 = vmatpush1.msra.mxu0 %v1397
        %1434 = vmatprep.subr.mxu0 0.0
        %1435 = vmatpush1.msra.mxu0 %v1398
        %1436 = vmatprep.subr.mxu0 0.0
        %1437 = vmatpush1.msra.mxu0 %v1399
        %1438 = vmatprep.subr.mxu0 0.0
        %1439 = vmatpush1.msra.mxu0 %v1400
        %1440 = vmatprep.subr.mxu0 0.0
        %1441 = vmatpush1.msra.mxu0 %v1401
        %1442 = vmatprep.subr.mxu0 0.0
        %1443 = vmatpush1.msra.mxu0 %v1402
        %1444 = vmatprep.subr.mxu0 0.0
        %1445 = vmatpush1.msra.mxu0 %v1403
        %1446 = vmatprep.subr.mxu0 0.0
        %1447 = vmatpush1.msra.mxu0 %v1404
        %1448 = vmatprep.subr.mxu0 0.0
        %1449 = vmatpush1.msra.mxu0 %v1405
        %1450 = vmatprep.subr.mxu0 0.0
        %1451 = vmatpush1.msra.mxu0 %v1406
        %1452 = vmatprep.subr.mxu0 0.0
        %1453 = vmatpush1.msra.mxu0 %v1407
        %1454 = vmatprep.subr.mxu0 0.0
        %1455 = vmatpush1.msra.mxu0 %v1408
        %1456 = vmatprep.subr.mxu0 0.0
        %1457 = vmatpush1.msra.mxu0 %v1409
        %1458 = vmatprep.subr.mxu0 0.0
        %1459 = vmatpush1.msra.mxu0 %v1410
        %1460 = vmatprep.subr.mxu0 0.0
        %1461 = vmatpush1.msra.mxu0 0.0
        %1462 = vmatprep.subr.mxu0 0.0
        %1463 = vmatpush1.msra.mxu0 0.0
        %1464 = vmatprep.subr.mxu0 0.0
        %1465 = vmatpush1.msra.mxu0 0.0
        %1466 = vmatprep.subr.mxu0 0.0
        %1467 = vmatpush1.msra.mxu0 0.0
        %1468 = vmatprep.subr.mxu0 0.0
        %1469 = vmatpush1.msra.mxu0 0.0
        %1470 = vmatprep.subr.mxu0 0.0
        %1471 = vmatpush1.msra.mxu0 0.0
        %1472 = vmatprep.subr.mxu0 0.0
        %1473 = vmatpush1.msra.mxu0 0.0
        %1474 = vmatprep.subr.mxu0 0.0
        %1475 = vmatpush1.msra.mxu0 0.0
        %1476 = vmatprep.subr.mxu0 0.0
        %1477 = vmatpush1.msra.mxu0 0.0
        %1478 = vmatprep.subr.mxu0 0.0
        %1479 = vmatpush1.msra.mxu0 0.0
        %1480 = vmatprep.subr.mxu0 0.0
        %1481 = vmatpush1.msra.mxu0 0.0
        %1482 = vmatprep.subr.mxu0 0.0
        %1483 = vmatpush1.msra.mxu0 0.0
        %1484 = vmatprep.subr.mxu0 0.0
        %1485 = vmatpush1.msra.mxu0 0.0
        %1486 = vmatprep.subr.mxu0 0.0
        %1487 = vmatpush1.msra.mxu0 0.0
        %1488 = vmatprep.subr.mxu0 0.0
        %1489 = vmatpush1.msra.mxu0 0.0
        %1490 = vmatprep.subr.mxu0 0.0
        %1491 = vmatpush1.msra.mxu0 0.0
        %1492 = vmatprep.mubr.f32.mxu0 0.0
        %1493 = vmatmul.mubr.f32.gmra.mrb[0].mxu0 %v1427
        %v1494 = vpop.f32.mrb[0].mxu0
        %v1495 = vadd.f32 0.0, %v1494
        %v1496 = vpop.f32.mrb[0].mxu0
        %1497 = vdwg.mxu0
        %1498 = vst [vmem:[%s488] sm:$0xff] %v1495
        %v1499 = vmul.f32 %v1495, %v1495
        %1500 = vadd.xlane.f32.xlu0 %v1499
        %v1501 = vpop.xlane.xlu0 %1500
        %v1502 = vld [vmem:[%s3] sm:$0xff]
        %v1503 = vld [vmem:[%s3 + $0x8] sm:$0xff]
        %v1504 = vld [vmem:[%s3 + $0x10] sm:$0xff]
        %v1505 = vld [vmem:[%s3 + $0x18] sm:$0xff]
        %v1506 = vld [vmem:[%s3 + $0x20] sm:$0xff]
        %v1507 = vld [vmem:[%s3 + $0x28] sm:$0xff]
        %v1508 = vld [vmem:[%s3 + $0x30] sm:$0xff]
        %v1509 = vld [vmem:[%s3 + $0x38] sm:$0xff]
        %v1510 = vld [vmem:[%s3 + $0x40] sm:$0xff]
        %v1511 = vld [vmem:[%s3 + $0x48] sm:$0xff]
        %v1512 = vld [vmem:[%s3 + $0x50] sm:$0xff]
        %v1513 = vld [vmem:[%s3 + $0x58] sm:$0xff]
        %v1514 = vld [vmem:[%s3 + $0x60] sm:$0xff]
        %v1515 = vld [vmem:[%s3 + $0x68] sm:$0xff]
        %v1516 = vld [vmem:[%s3 + $0x70] sm:$0xff]
        %v1517 = vld [vmem:[%s3 + $0x78] sm:$0xff]
        %1518 = vmatprep.subr.mxu0 0.0
        %1519 = vmatpush1.msra.mxu0 %v1502
        %1520 = vmatprep.subr.mxu0 0.0
        %1521 = vmatpush1.msra.mxu0 %v1503
        %1522 = vmatprep.subr.mxu0 0.0
        %1523 = vmatpush1.msra.mxu0 %v1504
        %1524 = vmatprep.subr.mxu0 0.0
        %1525 = vmatpush1.msra.mxu0 %v1505
        %1526 = vmatprep.subr.mxu0 0.0
        %1527 = vmatpush1.msra.mxu0 %v1506
        %1528 = vmatprep.subr.mxu0 0.0
        %1529 = vmatpush1.msra.mxu0 %v1507
        %1530 = vmatprep.subr.mxu0 0.0
        %1531 = vmatpush1.msra.mxu0 %v1508
        %1532 = vmatprep.subr.mxu0 0.0
        %1533 = vmatpush1.msra.mxu0 %v1509
        %1534 = vmatprep.subr.mxu0 0.0
        %1535 = vmatpush1.msra.mxu0 %v1510
        %1536 = vmatprep.subr.mxu0 0.0
        %1537 = vmatpush1.msra.mxu0 %v1511
        %1538 = vmatprep.subr.mxu0 0.0
        %1539 = vmatpush1.msra.mxu0 %v1512
        %1540 = vmatprep.subr.mxu0 0.0
        %1541 = vmatpush1.msra.mxu0 %v1513
        %1542 = vmatprep.subr.mxu0 0.0
        %1543 = vmatpush1.msra.mxu0 %v1514
        %1544 = vmatprep.subr.mxu0 0.0
        %1545 = vmatpush1.msra.mxu0 %v1515
        %1546 = vmatprep.subr.mxu0 0.0
        %1547 = vmatpush1.msra.mxu0 %v1516
        %1548 = vmatprep.subr.mxu0 0.0
        %1549 = vmatpush1.msra.mxu0 %v1517
        %1550 = vmatprep.subr.mxu0 0.0
        %1551 = vmatpush1.msra.mxu0 0.0
        %1552 = vmatprep.subr.mxu0 0.0
        %1553 = vmatpush1.msra.mxu0 0.0
        %1554 = vmatprep.subr.mxu0 0.0
        %1555 = vmatpush1.msra.mxu0 0.0
        %1556 = vmatprep.subr.mxu0 0.0
        %1557 = vmatpush1.msra.mxu0 0.0
        %1558 = vmatprep.subr.mxu0 0.0
        %1559 = vmatpush1.msra.mxu0 0.0
        %1560 = vmatprep.subr.mxu0 0.0
        %1561 = vmatpush1.msra.mxu0 0.0
        %1562 = vmatprep.subr.mxu0 0.0
        %1563 = vmatpush1.msra.mxu0 0.0
        %1564 = vmatprep.subr.mxu0 0.0
        %1565 = vmatpush1.msra.mxu0 0.0
        %1566 = vmatprep.subr.mxu0 0.0
        %1567 = vmatpush1.msra.mxu0 0.0
        %1568 = vmatprep.subr.mxu0 0.0
        %1569 = vmatpush1.msra.mxu0 0.0
        %1570 = vmatprep.subr.mxu0 0.0
        %1571 = vmatpush1.msra.mxu0 0.0
        %1572 = vmatprep.subr.mxu0 0.0
        %1573 = vmatpush1.msra.mxu0 0.0
        %1574 = vmatprep.subr.mxu0 0.0
        %1575 = vmatpush1.msra.mxu0 0.0
        %1576 = vmatprep.subr.mxu0 0.0
        %1577 = vmatpush1.msra.mxu0 0.0
        %1578 = vmatprep.subr.mxu0 0.0
        %1579 = vmatpush1.msra.mxu0 0.0
        %1580 = vmatprep.subr.mxu0 0.0
        %1581 = vmatpush1.msra.mxu0 0.0
        %1582 = vmatprep.mubr.f32.mxu0 0.0
        %1583 = vmatmul.mubr.f32.gmra.mrb[0].mxu0 %v1495
        %v1584 = vpop.f32.mrb[0].mxu0
        %v1585 = vadd.f32 0.0, %v1584
        %v1586 = vpop.f32.mrb[0].mxu0
        %1587 = vdwg.mxu0
        %v1588 = vmul.f32 %v1585, 2.0
        %v1589 = vsub.f32 %v1501, %v1588
        %v1590 = vld [vmem:[%s4] sm:$0x1]
        %v1592 = vlaneseq
        %v1593 = vshrl.u32 %v1592, 7
        %v1594 = vsub.s32 0, %v1593
        %v1595 = vrot.slane %v1590, %v1594
        %v1597 = vadd.f32 %v1589, %v1595
        %v1598 = vmax.f32 %v1597, 0.0
        %vm1599 = vcmask 64512
        %1600 = vst.msk [vmem:[%s515] sm:$0xff] %vm1599, %v1598
        %v1601 = vld [vmem:[%s5] sm:$0xff]
        %v1602 = vld [vmem:[%s5 + $0x8] sm:$0xff]
        %v1603 = vld [vmem:[%s5 + $0x10] sm:$0xff]
        %v1604 = vld [vmem:[%s5 + $0x18] sm:$0xff]
        %v1605 = vld [vmem:[%s5 + $0x20] sm:$0xff]
        %v1606 = vld [vmem:[%s5 + $0x28] sm:$0xff]
        %v1607 = vld [vmem:[%s5 + $0x30] sm:$0xff]
        %v1608 = vld [vmem:[%s5 + $0x38] sm:$0xff]
        %v1609 = vld [vmem:[%s5 + $0x40] sm:$0xff]
        %v1610 = vld [vmem:[%s5 + $0x48] sm:$0xff]
        %v1611 = vld [vmem:[%s5 + $0x50] sm:$0xff]
        %v1612 = vld [vmem:[%s5 + $0x58] sm:$0xff]
        %v1613 = vld [vmem:[%s5 + $0x60] sm:$0xff]
        %v1614 = vld [vmem:[%s5 + $0x68] sm:$0xff]
        %v1615 = vld [vmem:[%s5 + $0x70] sm:$0xff]
        %v1616 = vld [vmem:[%s5 + $0x78] sm:$0xff]
        %v1617 = vld [vmem:[%s6] sm:$0x1]
        %v1619 = vlaneseq
        %v1620 = vshrl.u32 %v1619, 7
        %v1621 = vsub.s32 0, %v1620
        %v1622 = vrot.slane %v1617, %v1621
        %1624 = vmatprep.subr.mxu0 0.0
        %1625 = vmatpush1.msra.mxu0 %v1601
        %1626 = vmatprep.subr.mxu0 0.0
        %1627 = vmatpush1.msra.mxu0 %v1602
        %1628 = vmatprep.subr.mxu0 0.0
        %1629 = vmatpush1.msra.mxu0 %v1603
        %1630 = vmatprep.subr.mxu0 0.0
        %1631 = vmatpush1.msra.mxu0 %v1604
        %1632 = vmatprep.subr.mxu0 0.0
        %1633 = vmatpush1.msra.mxu0 %v1605
        %1634 = vmatprep.subr.mxu0 0.0
        %1635 = vmatpush1.msra.mxu0 %v1606
        %1636 = vmatprep.subr.mxu0 0.0
        %1637 = vmatpush1.msra.mxu0 %v1607
        %1638 = vmatprep.subr.mxu0 0.0
        %1639 = vmatpush1.msra.mxu0 %v1608
        %1640 = vmatprep.subr.mxu0 0.0
        %1641 = vmatpush1.msra.mxu0 %v1609
        %1642 = vmatprep.subr.mxu0 0.0
        %1643 = vmatpush1.msra.mxu0 %v1610
        %1644 = vmatprep.subr.mxu0 0.0
        %1645 = vmatpush1.msra.mxu0 %v1611
        %1646 = vmatprep.subr.mxu0 0.0
        %1647 = vmatpush1.msra.mxu0 %v1612
        %1648 = vmatprep.subr.mxu0 0.0
        %1649 = vmatpush1.msra.mxu0 %v1613
        %1650 = vmatprep.subr.mxu0 0.0
        %1651 = vmatpush1.msra.mxu0 %v1614
        %1652 = vmatprep.subr.mxu0 0.0
        %1653 = vmatpush1.msra.mxu0 %v1615
        %1654 = vmatprep.subr.mxu0 0.0
        %1655 = vmatpush1.msra.mxu0 %v1616
        %1656 = vmatprep.subr.mxu0 0.0
        %1657 = vmatpush1.msra.mxu0 0.0
        %1658 = vmatprep.subr.mxu0 0.0
        %1659 = vmatpush1.msra.mxu0 0.0
        %1660 = vmatprep.subr.mxu0 0.0
        %1661 = vmatpush1.msra.mxu0 0.0
        %1662 = vmatprep.subr.mxu0 0.0
        %1663 = vmatpush1.msra.mxu0 0.0
        %1664 = vmatprep.subr.mxu0 0.0
        %1665 = vmatpush1.msra.mxu0 0.0
        %1666 = vmatprep.subr.mxu0 0.0
        %1667 = vmatpush1.msra.mxu0 0.0
        %1668 = vmatprep.subr.mxu0 0.0
        %1669 = vmatpush1.msra.mxu0 0.0
        %1670 = vmatprep.subr.mxu0 0.0
        %1671 = vmatpush1.msra.mxu0 0.0
        %1672 = vmatprep.subr.mxu0 0.0
        %1673 = vmatpush1.msra.mxu0 0.0
        %1674 = vmatprep.subr.mxu0 0.0
        %1675 = vmatpush1.msra.mxu0 0.0
        %1676 = vmatprep.subr.mxu0 0.0
        %1677 = vmatpush1.msra.mxu0 0.0
        %1678 = vmatprep.subr.mxu0 0.0
        %1679 = vmatpush1.msra.mxu0 0.0
        %1680 = vmatprep.subr.mxu0 0.0
        %1681 = vmatpush1.msra.mxu0 0.0
        %1682 = vmatprep.subr.mxu0 0.0
        %1683 = vmatpush1.msra.mxu0 0.0
        %1684 = vmatprep.subr.mxu0 0.0
        %1685 = vmatpush1.msra.mxu0 0.0
        %1686 = vmatprep.subr.mxu0 0.0
        %1687 = vmatpush1.msra.mxu0 0.0
        %1688 = vmatprep.mubr.f32.mxu0 0.0
        %1689 = vmatmul.mubr.f32.gmra.mrb[0].mxu0 %v1495
        %v1690 = vpop.f32.mrb[0].mxu0
        %v1691 = vadd.f32 %v1622, %v1690
        %v1692 = vpop.f32.mrb[0].mxu0
        %1693 = vdwg.mxu0
        %vm1694 = vcmask 31744
        %1695 = vst.msk [vmem:[%s506] sm:$0xff] %vm1694, %v1691
        %v1696 = vsel %vm1694, %v1691, -inf
        %1697 = vmax.xlane.f32.xlu0 %v1696
        %v1698 = vpop.xlane.xlu0 %1697
        %v1699 = vsub.f32 %v1691, %v1698
        %v1700 = vmul.f32 %v1699, 1.442695
        %v1701 = vpow.pop %v1700
        %v1702 = vsel %vm1694, %v1701, 0.0
        %1703 = vadd.xlane.f32.xlu0 %v1702
        %v1704 = vpop.xlane.xlu0 %1703
        %v1705 = vrcp.pop %v1704
        %v1706 = vmul.f32 %v1701, %v1705
        %1707 = vst.msk [vmem:[%s510] sm:$0xff] %vm1694, %v1706
        %p1708 = scmp.lt.s32.totalorder %s34, 1
        %s1709 = scalar_select %p1708, %s34, 1
        %s1710 = smul.addr %s1709, 8
        %s1711 = scalar_lea.vmem %s8, %s1710
        %p1712 = scmp.lt.s32.totalorder %s34, 1
        %s1713 = scalar_select %p1712, %s34, 1
        %s1714 = smul.addr %s1713, 8
        %s1715 = scalar_lea.vmem %s9, %s1714
        %s1716 = sand.u32 %s272, 1
        %s1717 = scalar_lea.sflag [#allocation4], %s1716
        %s1718 = sand.u32 %s272, 1
        %s1719 = smul.addr %s1718, 128
        %s1720 = scalar_lea.vmem [#allocation7], %s1719
        %s1721 = sand.u32 %s298, 1
        %s1722 = scalar_lea.sflag [#allocation9], %s1721
        %s1723 = sand.u32 %s298, 1
        %s1724 = smul.addr %s1723, 8
        %s1725 = scalar_lea.vmem [#allocation8], %s1724
        %p1726 = scmp.lt.s32.totalorder %s34, 1
        %s1727 = scalar_select %p1726, %s34, 1
        %s1728 = smul.addr %s1727, 8
        %s1729 = scalar_lea.vmem %s12, %s1728
        // Predicated region
        $region61: #{tpu_custom_call.1} parent=51 // pred_check
          %p1730 = pneg %p230
        $region62: #{tpu_custom_call.1} parent=51 // pred_check_branch
          %1732 = sbr.rel (%p1730) target = $region64
        $region63: #{tpu_custom_call.1} parent=51 // pred_region
          _
        $region64: #{tpu_custom_call.1} parent=51 // pred_fallthru
          _
        // Predicated region
        $region65: #{tpu_custom_call.1} parent=51 // pred_check
          %p1733 = pneg %p256
        $region66: #{tpu_custom_call.1} parent=51 // pred_check_branch
          %1735 = sbr.rel (%p1733) target = $region68
        $region67: #{tpu_custom_call.1} parent=51 // pred_region
          _
        $region68: #{tpu_custom_call.1} parent=51 // pred_fallthru
          _
        // Predicated region
        $region69: #{tpu_custom_call.1} parent=51 // pred_check
          %p1736 = pneg %p282
        $region70: #{tpu_custom_call.1} parent=51 // pred_check_branch
          %1738 = sbr.rel (%p1736) target = $region72
        $region71: #{tpu_custom_call.1} parent=51 // pred_region
          %s1739 = smul.u32 8, %s34
          %s1741 = ssub.s32 2048, 2048
          %1742 = vsyncadd %s1717, %s1741
          %s1743 = smul.addr %s1739, 2
          %s1744 = smul.addr %s1743, 128
          %s1745 = scalar_lea.hbm %s10, %s1744
          %s1746 = sshll.u32 %s1720, 4
          %s1747 = int_to_ptr.vmem [resolvable:$true] %s1746
          %1752 = dma.vmem_to_hbm [thread:$0]  %s1747, 2048, %s1745, %s1717, 128, 128, 8
        $region72: #{tpu_custom_call.1} parent=51 // pred_fallthru
          _
        // Predicated region
        $region73: #{tpu_custom_call.1} parent=51 // pred_check
          %p1753 = pneg %p308
        $region74: #{tpu_custom_call.1} parent=51 // pred_check_branch
          %1755 = sbr.rel (%p1753) target = $region76
        $region75: #{tpu_custom_call.1} parent=51 // pred_region
          %s1757 = ssub.s32 128, 128
          %1758 = vsyncadd %s1722, %s1757
          %s1759 = smul.addr %s34, 128
          %s1760 = scalar_lea.hbm %s11, %s1759
          %s1762 = sshll.u32 %s1725, 4
          %s1763 = int_to_ptr.vmem [resolvable:$true] %s1762
          %1765 = dma.vmem_to_hbm [thread:$0]  %s1763, 128, %s1760, %s1722
        $region76: #{tpu_custom_call.1} parent=51 // pred_fallthru
          _
        // Predicated region
        $region77: #{tpu_custom_call.1} parent=51 // pred_check
          %p1766 = pneg %p334
        $region78: #{tpu_custom_call.1} parent=51 // pred_check_branch
          %1768 = sbr.rel (%p1766) target = $region80
        $region79: #{tpu_custom_call.1} parent=51 // pred_region
          _
        $region80: #{tpu_custom_call.1} parent=51 // pred_fallthru
          _
      $region52: #{tpu_custom_call.1} parent=5 // pred_fallthru
        _
      %p1769 = scmp.le.s32.totalorder 2, %s29
      // Predicated region
      $region81: #{tpu_custom_call.1} parent=5 // pred_check
        %p1770 = pneg %p1769
      $region82: #{tpu_custom_call.1} parent=5 // pred_check_branch
        %1772 = sbr.rel (%p1770) target = $region84
      $region83: #{tpu_custom_call.1} parent=5 // pred_region
        %s1773 = ssub.s32 %s29, 2
        // Predicated region
        $region85: #{tpu_custom_call.1} parent=83 // pred_check
          %p1774 = pneg %p236
        $region86: #{tpu_custom_call.1} parent=83 // pred_check_branch
          %1776 = sbr.rel (%p1774) target = $region88
        $region87: #{tpu_custom_call.1} parent=83 // pred_region
          %p1777 = scmp.lt.s32.totalorder %s35, 1
          %s1778 = scalar_select %p1777, %s35, 1
          %s1779 = smul.addr %s1778, 8
          %s1780 = scalar_lea.vmem %s8, %s1779
        $region88: #{tpu_custom_call.1} parent=83 // pred_fallthru
          _
        // Predicated region
        $region89: #{tpu_custom_call.1} parent=83 // pred_check
          %p1781 = pneg %p262
        $region90: #{tpu_custom_call.1} parent=83 // pred_check_branch
          %1783 = sbr.rel (%p1781) target = $region92
        $region91: #{tpu_custom_call.1} parent=83 // pred_region
          %p1784 = scmp.lt.s32.totalorder %s35, 1
          %s1785 = scalar_select %p1784, %s35, 1
          %s1786 = smul.addr %s1785, 8
          %s1787 = scalar_lea.vmem %s9, %s1786
        $region92: #{tpu_custom_call.1} parent=83 // pred_fallthru
          _
        // Predicated region
        $region93: #{tpu_custom_call.1} parent=83 // pred_check
          %p1788 = pneg %p288
        $region94: #{tpu_custom_call.1} parent=83 // pred_check_branch
          %1790 = sbr.rel (%p1788) target = $region96
        $region95: #{tpu_custom_call.1} parent=83 // pred_region
          %s1791 = sand.u32 %s273, 1
          %s1792 = scalar_lea.sflag [#allocation4], %s1791
          %s1793 = sand.u32 %s273, 1
          %s1794 = smul.addr %s1793, 128
          %s1795 = scalar_lea.vmem [#allocation7], %s1794
          %1796 = dma.done %s1792, 2048
        $region96: #{tpu_custom_call.1} parent=83 // pred_fallthru
          _
        // Predicated region
        $region97: #{tpu_custom_call.1} parent=83 // pred_check
          %p1797 = pneg %p314
        $region98: #{tpu_custom_call.1} parent=83 // pred_check_branch
          %1799 = sbr.rel (%p1797) target = $region100
        $region99: #{tpu_custom_call.1} parent=83 // pred_region
          %s1800 = sand.u32 %s299, 1
          %s1801 = scalar_lea.sflag [#allocation9], %s1800
          %s1802 = sand.u32 %s299, 1
          %s1803 = smul.addr %s1802, 8
          %s1804 = scalar_lea.vmem [#allocation8], %s1803
          %1805 = dma.done %s1801, 128
        $region100: #{tpu_custom_call.1} parent=83 // pred_fallthru
          _
        // Predicated region
        $region101: #{tpu_custom_call.1} parent=83 // pred_check
          %p1806 = pneg %p340
        $region102: #{tpu_custom_call.1} parent=83 // pred_check_branch
          %1808 = sbr.rel (%p1806) target = $region104
        $region103: #{tpu_custom_call.1} parent=83 // pred_region
          %p1809 = scmp.lt.s32.totalorder %s35, 1
          %s1810 = scalar_select %p1809, %s35, 1
          %s1811 = smul.addr %s1810, 8
          %s1812 = scalar_lea.vmem %s12, %s1811
        $region104: #{tpu_custom_call.1} parent=83 // pred_fallthru
          _
      $region84: #{tpu_custom_call.1} parent=5 // pred_fallthru
        _
    $region6: #{tpu_custom_call.1} parent=1 // loop_footer
      %s33 = sadd.s32 1, %s29
    $region7: #{tpu_custom_call.1} parent=1 // loop_footer_branch
      %28 = sbr.rel target = $region3
    $region8: #{tpu_custom_call.1} parent=1 // loop_exit
      _
    %1813 = vsyncpa [#allocation3], 1
    %s1814 = scalar_lea.sflag [#allocation3], 1
    %1815 = vsyncpa %s1814, 1
    %1816 = vsyncpa [#allocation6], 1
    %1817 = vsyncpa [#allocation4], 1
    %s1818 = scalar_lea.sflag [#allocation4], 1
    %1819 = vsyncpa %s1818, 1
    %1820 = vsyncpa [#allocation9], 1
    %s1821 = scalar_lea.sflag [#allocation9], 1
    %1822 = vsyncpa %s1821, 1

</llo_original>
